<compile_context>
chip_gen: v6e
topology: v6e:2x2x1
jax: 0.10.0
libtpu: 0.0.40
codegen_flags: <defaults>
</compile_context>

<pallas_src>
import jax
import jax.numpy as jnp
from jax.experimental import pallas as pl
from jax.experimental.pallas import tpu as pltpu


_SQRT_2_OVER_PI = 0.7978845608028654


def _gelu_tanh(x):
    return 0.5 * x * (1.0 + jnp.tanh(_SQRT_2_OVER_PI * (x + 0.044715 * x * x * x)))


def _make_kernel(*, n, heads, dim_head, eps):
    scale = float(dim_head) ** -0.5
    inner = heads * dim_head
    bf16 = jnp.bfloat16

    def _layer_norm(x2d, g, b):
        mu = jnp.mean(x2d, axis=-1, keepdims=True)
        xc = x2d - mu
        var = jnp.mean(xc * xc, axis=-1, keepdims=True)
        return xc * jax.lax.rsqrt(var + eps) * g + b

    def kernel(x_ref, ln1_g, ln1_b, wqkv, wout, bout,
               ln2_g, ln2_b, wff1, bff1, wff2, bff2,
               o_ref, act_ref):
        d = pl.program_id(1)
        m, dim = x_ref.shape
        bt = m // n

        # Load the batch tile from HBM only on the first layer; afterwards the
        # activations stay resident in VMEM scratch across the depth axis.
        @pl.when(d == 0)
        def _():
            act_ref[...] = x_ref[...]

        x2 = act_ref[...]                                   # (m, dim) f32 residual stream

        # ---------------- PreNorm attention + residual ----------------
        h = _layer_norm(x2, ln1_g[...], ln1_b[...])
        # One tall (m, dim) @ (dim, 3*inner) bf16 MXU matmul for Q, K and V together.
        qkv = jnp.dot(h.astype(bf16), wqkv[...],
                      preferred_element_type=jnp.float32)   # (m, 3*inner) f32

        head_outs = []
        for hh in range(heads):                             # static unroll over heads
            q = qkv[:, hh * dim_head:(hh + 1) * dim_head].reshape(bt, n, dim_head)
            k = qkv[:, inner + hh * dim_head: inner + (hh + 1) * dim_head].reshape(bt, n, dim_head)
            v = qkv[:, 2 * inner + hh * dim_head: 2 * inner + (hh + 1) * dim_head].reshape(bt, n, dim_head)
            dots = jnp.einsum('bid,bjd->bij', q.astype(bf16), k.astype(bf16),
                              preferred_element_type=jnp.float32) * scale
            dmax = jnp.max(dots, axis=-1, keepdims=True)
            pexp = jnp.exp(dots - dmax)
            attn = pexp * pl.reciprocal(jnp.sum(pexp, axis=-1, keepdims=True), approx=True)
            o_h = jnp.einsum('bij,bjd->bid', attn.astype(bf16), v.astype(bf16),
                             preferred_element_type=jnp.float32)
            head_outs.append(o_h.reshape(m, dim_head))
        attn_cat = jnp.concatenate(head_outs, axis=-1)      # (m, inner) f32

        x2 = x2 + jnp.dot(attn_cat.astype(bf16), wout[...],
                          preferred_element_type=jnp.float32) + bout[...]

        # ---------------- PreNorm feed-forward + residual ----------------
        h2 = _layer_norm(x2, ln2_g[...], ln2_b[...])
        f = jnp.dot(h2.astype(bf16), wff1[...],
                    preferred_element_type=jnp.float32) + bff1[...]
        f = _gelu_tanh(f)
        f = jnp.dot(f.astype(bf16), wff2[...],
                    preferred_element_type=jnp.float32) + bff2[...]
        x2 = x2 + f

        act_ref[...] = x2                                   # carry to the next layer

        @pl.when(d == pl.num_programs(1) - 1)
        def _():
            o_ref[...] = x2                                 # single HBM writeback per tile

    return kernel


def _default_b_tile(b, n, dim, inner, mlp_dim):
    # VMEM budget ~8 MiB of f32 rows for the widest intermediate, m multiple of 256 when
    # possible (full MXU tiles), and >= 2 grid steps on the parallel axis (v7x megacore).
    widest = max(dim, 3 * inner, mlp_dim)
    cap_rows = max(256, (8 << 20) // (4 * widest))
    cap = max(1, cap_rows // n)
    if cap >= 32:
        cap -= cap % 32
    if b >= 2:
        cap = min(cap, b // 2)
    cap = max(1, min(cap, b))
    return next(d for d in range(cap, 0, -1) if b % d == 0)


def transformer_forward(x, layer_params, *, heads, dim_head, b_tile=None, eps=1e-5):
    """Full Transformer forward. x: (b, n, dim) float32."""
    b, n, dim = x.shape
    depth = len(layer_params)
    inner = heads * dim_head
    mlp_dim = layer_params[0]["wff1"].shape[1]

    if b_tile is None:
        b_tile = _default_b_tile(b, n, dim, inner, mlp_dim)
    assert b % b_tile == 0, "batch must be divisible by b_tile"
    tile_m = b_tile * n
    assert tile_m % 8 == 0 or b_tile == b, \
        "b_tile*n must be a multiple of 8 (f32 sublane tile) unless a single tile covers the batch"

    # Stack per-layer parameters with a leading depth axis. Dense weights go to bf16 for the
    # MXU (halves their DMA bytes and resident VMEM); LN params / biases stay f32.
    def stk(name, dtype=jnp.float32):
        return jnp.stack([p[name] for p in layer_params]).astype(dtype)

    ln1_g = stk("ln1_g").reshape(depth, 1, dim)
    ln1_b = stk("ln1_b").reshape(depth, 1, dim)
    wqkv = stk("wqkv", jnp.bfloat16)                    # (depth, dim, 3*inner)
    wout = stk("wout", jnp.bfloat16)                    # (depth, inner, dim)
    bout = stk("bout").reshape(depth, 1, dim)
    ln2_g = stk("ln2_g").reshape(depth, 1, dim)
    ln2_b = stk("ln2_b").reshape(depth, 1, dim)
    wff1 = stk("wff1", jnp.bfloat16)                    # (depth, dim, mlp_dim)
    bff1 = stk("bff1").reshape(depth, 1, mlp_dim)
    wff2 = stk("wff2", jnp.bfloat16)                    # (depth, mlp_dim, dim)
    bff2 = stk("bff2").reshape(depth, 1, dim)

    # Scoped-VMEM hint from the per-step live set (double-buffered x/out tiles + one layer's
    # double-buffered weights + resident activation scratch + matmul intermediates).
    w_bytes = 2 * (dim * 3 * inner + inner * dim + dim * mlp_dim + mlp_dim * dim)   # bf16
    small_bytes = 4 * (6 * dim + mlp_dim)
    act_bytes = 4 * tile_m * dim
    inter_bytes = 4 * tile_m * (3 * inner + mlp_dim)
    live = 4 * act_bytes + 2 * (w_bytes + small_bytes) + act_bytes + inter_bytes
    vmem_limit = int(min(64 << 20, max(32 << 20, 2 * live)))

    # 2D (b*n, dim) presentation at the pallas_call boundary (no in-kernel (b,n,dim) reshapes).
    x2 = x.reshape(b * n, dim)
    grid = (b // b_tile, depth)

    def wspec(*dims):
        # Per-layer parameter block: leading depth dim squeezed, indexed by the depth coord.
        return pl.BlockSpec((None,) + tuple(dims), lambda i, d: (d,) + (0,) * len(dims))

    kernel = _make_kernel(n=n, heads=heads, dim_head=dim_head, eps=eps)

    out2 = pl.pallas_call(
        kernel,
        out_shape=jax.ShapeDtypeStruct((b * n, dim), jnp.float32),
        grid_spec=pltpu.PrefetchScalarGridSpec(
            num_scalar_prefetch=0,
            grid=grid,
            in_specs=[
                pl.BlockSpec((tile_m, dim), lambda i, d: (i, 0)),   # x (read at depth 0 only)
                wspec(1, dim), wspec(1, dim),                       # LN1 gamma/beta
                wspec(dim, 3 * inner),                              # W_qkv (pre-transposed, bf16)
                wspec(inner, dim), wspec(1, dim),                   # W_out (bf16), b_out
                wspec(1, dim), wspec(1, dim),                       # LN2 gamma/beta
                wspec(dim, mlp_dim), wspec(1, mlp_dim),             # FF1 (bf16), b_ff1
                wspec(mlp_dim, dim), wspec(1, dim),                 # FF2 (bf16), b_ff2
            ],
            out_specs=pl.BlockSpec((tile_m, dim), lambda i, d: (i, 0)),
            scratch_shapes=[pltpu.VMEM((tile_m, dim), jnp.float32)],  # resident activations
        ),
        compiler_params=pltpu.CompilerParams(
            dimension_semantics=("parallel", "arbitrary"),
            vmem_limit_bytes=vmem_limit),
    )(x2, ln1_g, ln1_b, wqkv, wout, bout, ln2_g, ln2_b, wff1, bff1, wff2, bff2)

    return out2.reshape(b, n, dim)


# ------------------------- pure-JAX reference (f32) -------------------------

def _layer_norm_ref(x, g, b, eps=1e-5):
    mu = jnp.mean(x, axis=-1, keepdims=True)
    var = jnp.mean((x - mu) ** 2, axis=-1, keepdims=True)
    return (x - mu) * jax.lax.rsqrt(var + eps) * g + b


def transformer_reference(x, layer_params, *, heads, dim_head, eps=1e-5):
    scale = float(dim_head) ** -0.5
    inner = heads * dim_head
    for p in layer_params:
        b, n, dim = x.shape
        h = _layer_norm_ref(x, p["ln1_g"], p["ln1_b"], eps)
        qkv = h @ p["wqkv"]
        q, k, v = jnp.split(qkv, 3, axis=-1)
        def split_heads(t):
            return t.reshape(b, n, heads, dim_head).transpose(0, 2, 1, 3)
        q, k, v = map(split_heads, (q, k, v))
        dots = jnp.einsum('bhid,bhjd->bhij', q, k) * scale
        attn = jax.nn.softmax(dots, axis=-1)
        out = jnp.einsum('bhij,bhjd->bhid', attn, v)
        out = out.transpose(0, 2, 1, 3).reshape(b, n, inner)
        x = x + out @ p["wout"] + p["bout"]
        h2 = _layer_norm_ref(x, p["ln2_g"], p["ln2_b"], eps)
        f = _gelu_tanh(h2 @ p["wff1"] + p["bff1"])
        x = x + f @ p["wff2"] + p["bff2"]
    return x


def init_layer_params(key, dim, heads, dim_head, mlp_dim):
    inner = heads * dim_head
    ks = jax.random.split(key, 12)
    s_dim = 1.0 / jnp.sqrt(dim)
    s_inner = 1.0 / jnp.sqrt(inner)
    s_mlp = 1.0 / jnp.sqrt(mlp_dim)
    return dict(
        ln1_g=1.0 + 0.1 * jax.random.normal(ks[0], (dim,), jnp.float32),
        ln1_b=0.1 * jax.random.normal(ks[1], (dim,), jnp.float32),
        wqkv=s_dim * jax.random.normal(ks[2], (dim, 3 * inner), jnp.float32),
        wout=s_inner * jax.random.normal(ks[3], (inner, dim), jnp.float32),
        bout=0.1 * jax.random.normal(ks[4], (dim,), jnp.float32),
        ln2_g=1.0 + 0.1 * jax.random.normal(ks[5], (dim,), jnp.float32),
        ln2_b=0.1 * jax.random.normal(ks[6], (dim,), jnp.float32),
        wff1=s_dim * jax.random.normal(ks[7], (dim, mlp_dim), jnp.float32),
        bff1=0.1 * jax.random.normal(ks[8], (mlp_dim,), jnp.float32),
        wff2=s_mlp * jax.random.normal(ks[9], (mlp_dim,), jnp.float32) if False else
             s_mlp * jax.random.normal(ks[9], (mlp_dim, dim), jnp.float32),
        bff2=0.1 * jax.random.normal(ks[10], (dim,), jnp.float32),
    )


if __name__ == "__main__":
    # Small shapes consistent with the module:
    # batch=4, seq=8, dim=32, heads=4, dim_head=8 (inner_dim=32), mlp_dim=64, depth=2.
    B, N, DIM, HEADS, DIM_HEAD, MLP_DIM, DEPTH = 4, 8, 32, 4, 8, 64, 2
    B_TILE = 2   # grid = (2 parallel batch tiles, DEPTH arbitrary) -> exercises megacore + fusion

    key = jax.random.PRNGKey(0)
    kx, *lkeys = jax.random.split(key, DEPTH + 1)
    x = jax.random.normal(kx, (B, N, DIM), dtype=jnp.float32)
    layer_params = [init_layer_params(k, DIM, HEADS, DIM_HEAD, MLP_DIM) for k in lkeys]

    out = transformer_forward(x, layer_params, heads=HEADS, dim_head=DIM_HEAD, b_tile=B_TILE)
    out = jax.block_until_ready(out)

    ref = transformer_reference(x, layer_params, heads=HEADS, dim_head=DIM_HEAD)
    assert out.shape == (B, N, DIM)
    max_err = float(jnp.max(jnp.abs(out - ref)))
    # Tolerance covers bf16 MXU operands and the EUP approximate softmax reciprocal
    # versus the all-f32 reference.
    assert jnp.allclose(out, ref, atol=1e-1, rtol=2e-2), f"mismatch vs reference, max abs err={max_err}"

    print("KERNEL_OK")
</pallas_src>

<mosaic_0001>
module attributes {stable_mosaic.version = 11 : i64} {
  func.func @kernel(%arg0: i32, %arg1: i32, %arg2: memref<16x32xf32, #tpu.memory_space<vmem>>, %arg3: memref<1x1x32xf32, #tpu.memory_space<vmem>>, %arg4: memref<1x1x32xf32, #tpu.memory_space<vmem>>, %arg5: memref<1x32x96xbf16, #tpu.memory_space<vmem>>, %arg6: memref<1x32x32xbf16, #tpu.memory_space<vmem>>, %arg7: memref<1x1x32xf32, #tpu.memory_space<vmem>>, %arg8: memref<1x1x32xf32, #tpu.memory_space<vmem>>, %arg9: memref<1x1x32xf32, #tpu.memory_space<vmem>>, %arg10: memref<1x32x64xbf16, #tpu.memory_space<vmem>>, %arg11: memref<1x1x64xf32, #tpu.memory_space<vmem>>, %arg12: memref<1x64x32xbf16, #tpu.memory_space<vmem>>, %arg13: memref<1x1x32xf32, #tpu.memory_space<vmem>>, %arg14: memref<16x32xf32, #tpu.memory_space<vmem>>, %arg15: memref<16x32xf32, #tpu.memory_space<vmem>>) attributes {dimension_semantics = [#tpu.dimension_semantics<parallel>, #tpu.dimension_semantics<arbitrary>], iteration_bounds = array<i64: 2, 2>, scalar_prefetch = 0 : i64, scratch_operands = 1 : i64, tpu.core_type = #tpu.core_type<tc>, window_params = [{transform_indices = @transform_0, window_bounds = array<i64: 16, 32>}, {transform_indices = @transform_1, window_bounds = array<i64: 1, 1, 32>}, {transform_indices = @transform_2, window_bounds = array<i64: 1, 1, 32>}, {transform_indices = @transform_3, window_bounds = array<i64: 1, 32, 96>}, {transform_indices = @transform_4, window_bounds = array<i64: 1, 32, 32>}, {transform_indices = @transform_5, window_bounds = array<i64: 1, 1, 32>}, {transform_indices = @transform_6, window_bounds = array<i64: 1, 1, 32>}, {transform_indices = @transform_7, window_bounds = array<i64: 1, 1, 32>}, {transform_indices = @transform_8, window_bounds = array<i64: 1, 32, 64>}, {transform_indices = @transform_9, window_bounds = array<i64: 1, 1, 64>}, {transform_indices = @transform_10, window_bounds = array<i64: 1, 64, 32>}, {transform_indices = @transform_11, window_bounds = array<i64: 1, 1, 32>}, {transform_indices = @transform_12, window_bounds = array<i64: 16, 32>}]} {
    %c0_i32 = arith.constant 0 : i32
    %0 = arith.cmpi eq, %arg1, %c0_i32 : i32
    %1 = arith.extui %0 : i1 to i32
    %c0_i32_0 = arith.constant 0 : i32
    %2 = arith.cmpi ne, %1, %c0_i32_0 : i32
    scf.if %2 {
      %c0_75 = arith.constant 0 : index
      %c0_76 = arith.constant 0 : index
      %200 = vector.load %arg2[%c0_75, %c0_76] : memref<16x32xf32, #tpu.memory_space<vmem>>, vector<16x32xf32>
      %c0_77 = arith.constant 0 : index
      %c0_78 = arith.constant 0 : index
      %201 = vector.load %arg15[%c0_77, %c0_78] : memref<16x32xf32, #tpu.memory_space<vmem>>, vector<16x32xf32>
      tpu.vector_store %arg15[%c0_77, %c0_78], %200 {strides = array<i32>} : memref<16x32xf32, #tpu.memory_space<vmem>>, vector<16x32xf32>,
    } else {
    }
    %c0 = arith.constant 0 : index
    %c0_1 = arith.constant 0 : index
    %3 = vector.load %arg15[%c0, %c0_1] : memref<16x32xf32, #tpu.memory_space<vmem>>, vector<16x32xf32>
    %c0_2 = arith.constant 0 : index
    %c0_3 = arith.constant 0 : index
    %c0_4 = arith.constant 0 : index
    %4 = vector.load %arg3[%c0_2, %c0_3, %c0_4] : memref<1x1x32xf32, #tpu.memory_space<vmem>>, vector<1x1x32xf32>
    %5 = vector.shape_cast %4 : vector<1x1x32xf32> to vector<1x32xf32>
    %c0_5 = arith.constant 0 : index
    %c0_6 = arith.constant 0 : index
    %c0_7 = arith.constant 0 : index
    %6 = vector.load %arg4[%c0_5, %c0_6, %c0_7] : memref<1x1x32xf32, #tpu.memory_space<vmem>>, vector<1x1x32xf32>
    %7 = vector.shape_cast %6 : vector<1x1x32xf32> to vector<1x32xf32>
    %cst = arith.constant dense<0.000000e+00> : vector<16xf32>
    %8 = vector.multi_reduction <add>, %3, %cst [1] : vector<16x32xf32> to vector<16xf32>
    %9 = vector.shape_cast %8 : vector<16xf32> to vector<16x1xf32>
    %cst_8 = arith.constant 3.200000e+01 : f32
    %10 = vector.broadcast %cst_8 : f32 to vector<16x1xf32>
    %11 = arith.divf %9, %10 : vector<16x1xf32>
    %12 = vector.broadcast %11 : vector<16x1xf32> to vector<16x32xf32>
    %13 = arith.subf %3, %12 : vector<16x32xf32>
    %14 = arith.mulf %13, %13 : vector<16x32xf32>
    %cst_9 = arith.constant dense<0.000000e+00> : vector<16xf32>
    %15 = vector.multi_reduction <add>, %14, %cst_9 [1] : vector<16x32xf32> to vector<16xf32>
    %16 = vector.shape_cast %15 : vector<16xf32> to vector<16x1xf32>
    %cst_10 = arith.constant 3.200000e+01 : f32
    %17 = vector.broadcast %cst_10 : f32 to vector<16x1xf32>
    %18 = arith.divf %16, %17 : vector<16x1xf32>
    %cst_11 = arith.constant 9.99999974E-6 : f32
    %19 = vector.broadcast %cst_11 : f32 to vector<16x1xf32>
    %20 = arith.addf %18, %19 : vector<16x1xf32>
    %21 = math.rsqrt %20 : vector<16x1xf32>
    %22 = vector.broadcast %21 : vector<16x1xf32> to vector<16x32xf32>
    %23 = arith.mulf %13, %22 : vector<16x32xf32>
    %24 = vector.broadcast %5 : vector<1x32xf32> to vector<16x32xf32>
    %25 = arith.mulf %23, %24 : vector<16x32xf32>
    %26 = vector.broadcast %7 : vector<1x32xf32> to vector<16x32xf32>
    %27 = arith.addf %25, %26 : vector<16x32xf32>
    %28 = arith.truncf %27 : vector<16x32xf32> to vector<16x32xbf16>
    %c0_12 = arith.constant 0 : index
    %c0_13 = arith.constant 0 : index
    %c0_14 = arith.constant 0 : index
    %29 = vector.load %arg5[%c0_12, %c0_13, %c0_14] : memref<1x32x96xbf16, #tpu.memory_space<vmem>>, vector<1x32x96xbf16>
    %30 = vector.shape_cast %29 : vector<1x32x96xbf16> to vector<32x96xbf16>
    %cst_15 = arith.constant dense<0.000000e+00> : vector<16x96xf32>
    %31 = tpu.matmul %28, %30, %cst_15 {dimension_numbers = #tpu.dot_dimension_numbers<[1], [0], [0], [1], [0, 0, 1, 1], [], []>} : vector<16x32xbf16>, vector<32x96xbf16>, vector<16x96xf32> -> vector<16x96xf32>
    %32 = vector.extract_strided_slice %31 {offsets = [0, 0], sizes = [16, 8], strides = [1, 1]} : vector<16x96xf32> to vector<16x8xf32>
    %33 = vector.shape_cast %32 : vector<16x8xf32> to vector<2x8x8xf32>
    %34 = vector.extract_strided_slice %31 {offsets = [0, 32], sizes = [16, 8], strides = [1, 1]} : vector<16x96xf32> to vector<16x8xf32>
    %35 = vector.shape_cast %34 : vector<16x8xf32> to vector<2x8x8xf32>
    %36 = vector.extract_strided_slice %31 {offsets = [0, 64], sizes = [16, 8], strides = [1, 1]} : vector<16x96xf32> to vector<16x8xf32>
    %37 = vector.shape_cast %36 : vector<16x8xf32> to vector<2x8x8xf32>
    %38 = arith.truncf %33 : vector<2x8x8xf32> to vector<2x8x8xbf16>
    %39 = arith.truncf %35 : vector<2x8x8xf32> to vector<2x8x8xbf16>
    "tpu.trace_start"() <{level = 10 : i32, message = "bid,bjd->bij"}> : () -> ()
    %cst_16 = arith.constant dense<0.000000e+00> : vector<2x8x8xf32>
    %40 = tpu.matmul %38, %39, %cst_16 {dimension_numbers = #tpu.dot_dimension_numbers<[2], [2], [1], [1], [0, 0, 0, 1, 1, 1], [0], [0]>} : vector<2x8x8xbf16>, vector<2x8x8xbf16>, vector<2x8x8xf32> -> vector<2x8x8xf32>
    "tpu.trace_stop"() : () -> ()
    %cst_17 = arith.constant 0.353553385 : f32
    %41 = vector.broadcast %cst_17 : f32 to vector<2x8x8xf32>
    %42 = arith.mulf %40, %41 : vector<2x8x8xf32>
    %cst_18 = arith.constant dense<0xFF800000> : vector<2x8xf32>
    %43 = vector.multi_reduction <maximumf>, %42, %cst_18 [2] : vector<2x8x8xf32> to vector<2x8xf32>
    %44 = vector.shape_cast %43 : vector<2x8xf32> to vector<2x8x1xf32>
    %45 = vector.broadcast %44 : vector<2x8x1xf32> to vector<2x8x8xf32>
    %46 = arith.subf %42, %45 : vector<2x8x8xf32>
    %47 = math.exp %46 : vector<2x8x8xf32>
    %cst_19 = arith.constant dense<0.000000e+00> : vector<2x8xf32>
    %48 = vector.multi_reduction <add>, %47, %cst_19 [2] : vector<2x8x8xf32> to vector<2x8xf32>
    %49 = vector.shape_cast %48 : vector<2x8xf32> to vector<2x8x1xf32>
    %50 = tpu.reciprocal %49 {approx = true} : vector<2x8x1xf32> -> vector<2x8x1xf32>
    %51 = vector.broadcast %50 : vector<2x8x1xf32> to vector<2x8x8xf32>
    %52 = arith.mulf %47, %51 : vector<2x8x8xf32>
    %53 = arith.truncf %52 : vector<2x8x8xf32> to vector<2x8x8xbf16>
    %54 = arith.truncf %37 : vector<2x8x8xf32> to vector<2x8x8xbf16>
    "tpu.trace_start"() <{level = 10 : i32, message = "bij,bjd->bid"}> : () -> ()
    %cst_20 = arith.constant dense<0.000000e+00> : vector<2x8x8xf32>
    %55 = tpu.matmul %53, %54, %cst_20 {dimension_numbers = #tpu.dot_dimension_numbers<[2], [1], [1], [2], [0, 0, 0, 1, 1, 2], [0], [0]>} : vector<2x8x8xbf16>, vector<2x8x8xbf16>, vector<2x8x8xf32> -> vector<2x8x8xf32>
    "tpu.trace_stop"() : () -> ()
    %56 = vector.shape_cast %55 : vector<2x8x8xf32> to vector<16x8xf32>
    %57 = vector.extract_strided_slice %31 {offsets = [0, 8], sizes = [16, 8], strides = [1, 1]} : vector<16x96xf32> to vector<16x8xf32>
    %58 = vector.shape_cast %57 : vector<16x8xf32> to vector<2x8x8xf32>
    %59 = vector.extract_strided_slice %31 {offsets = [0, 40], sizes = [16, 8], strides = [1, 1]} : vector<16x96xf32> to vector<16x8xf32>
    %60 = vector.shape_cast %59 : vector<16x8xf32> to vector<2x8x8xf32>
    %61 = vector.extract_strided_slice %31 {offsets = [0, 72], sizes = [16, 8], strides = [1, 1]} : vector<16x96xf32> to vector<16x8xf32>
    %62 = vector.shape_cast %61 : vector<16x8xf32> to vector<2x8x8xf32>
    %63 = arith.truncf %58 : vector<2x8x8xf32> to vector<2x8x8xbf16>
    %64 = arith.truncf %60 : vector<2x8x8xf32> to vector<2x8x8xbf16>
    "tpu.trace_start"() <{level = 10 : i32, message = "bid,bjd->bij"}> : () -> ()
    %cst_21 = arith.constant dense<0.000000e+00> : vector<2x8x8xf32>
    %65 = tpu.matmul %63, %64, %cst_21 {dimension_numbers = #tpu.dot_dimension_numbers<[2], [2], [1], [1], [0, 0, 0, 1, 1, 1], [0], [0]>} : vector<2x8x8xbf16>, vector<2x8x8xbf16>, vector<2x8x8xf32> -> vector<2x8x8xf32>
    "tpu.trace_stop"() : () -> ()
    %cst_22 = arith.constant 0.353553385 : f32
    %66 = vector.broadcast %cst_22 : f32 to vector<2x8x8xf32>
    %67 = arith.mulf %65, %66 : vector<2x8x8xf32>
    %cst_23 = arith.constant dense<0xFF800000> : vector<2x8xf32>
    %68 = vector.multi_reduction <maximumf>, %67, %cst_23 [2] : vector<2x8x8xf32> to vector<2x8xf32>
    %69 = vector.shape_cast %68 : vector<2x8xf32> to vector<2x8x1xf32>
    %70 = vector.broadcast %69 : vector<2x8x1xf32> to vector<2x8x8xf32>
    %71 = arith.subf %67, %70 : vector<2x8x8xf32>
    %72 = math.exp %71 : vector<2x8x8xf32>
    %cst_24 = arith.constant dense<0.000000e+00> : vector<2x8xf32>
    %73 = vector.multi_reduction <add>, %72, %cst_24 [2] : vector<2x8x8xf32> to vector<2x8xf32>
    %74 = vector.shape_cast %73 : vector<2x8xf32> to vector<2x8x1xf32>
    %75 = tpu.reciprocal %74 {approx = true} : vector<2x8x1xf32> -> vector<2x8x1xf32>
    %76 = vector.broadcast %75 : vector<2x8x1xf32> to vector<2x8x8xf32>
    %77 = arith.mulf %72, %76 : vector<2x8x8xf32>
    %78 = arith.truncf %77 : vector<2x8x8xf32> to vector<2x8x8xbf16>
    %79 = arith.truncf %62 : vector<2x8x8xf32> to vector<2x8x8xbf16>
    "tpu.trace_start"() <{level = 10 : i32, message = "bij,bjd->bid"}> : () -> ()
    %cst_25 = arith.constant dense<0.000000e+00> : vector<2x8x8xf32>
    %80 = tpu.matmul %78, %79, %cst_25 {dimension_numbers = #tpu.dot_dimension_numbers<[2], [1], [1], [2], [0, 0, 0, 1, 1, 2], [0], [0]>} : vector<2x8x8xbf16>, vector<2x8x8xbf16>, vector<2x8x8xf32> -> vector<2x8x8xf32>
    "tpu.trace_stop"() : () -> ()
    %81 = vector.shape_cast %80 : vector<2x8x8xf32> to vector<16x8xf32>
    %82 = vector.extract_strided_slice %31 {offsets = [0, 16], sizes = [16, 8], strides = [1, 1]} : vector<16x96xf32> to vector<16x8xf32>
    %83 = vector.shape_cast %82 : vector<16x8xf32> to vector<2x8x8xf32>
    %84 = vector.extract_strided_slice %31 {offsets = [0, 48], sizes = [16, 8], strides = [1, 1]} : vector<16x96xf32> to vector<16x8xf32>
    %85 = vector.shape_cast %84 : vector<16x8xf32> to vector<2x8x8xf32>
    %86 = vector.extract_strided_slice %31 {offsets = [0, 80], sizes = [16, 8], strides = [1, 1]} : vector<16x96xf32> to vector<16x8xf32>
    %87 = vector.shape_cast %86 : vector<16x8xf32> to vector<2x8x8xf32>
    %88 = arith.truncf %83 : vector<2x8x8xf32> to vector<2x8x8xbf16>
    %89 = arith.truncf %85 : vector<2x8x8xf32> to vector<2x8x8xbf16>
    "tpu.trace_start"() <{level = 10 : i32, message = "bid,bjd->bij"}> : () -> ()
    %cst_26 = arith.constant dense<0.000000e+00> : vector<2x8x8xf32>
    %90 = tpu.matmul %88, %89, %cst_26 {dimension_numbers = #tpu.dot_dimension_numbers<[2], [2], [1], [1], [0, 0, 0, 1, 1, 1], [0], [0]>} : vector<2x8x8xbf16>, vector<2x8x8xbf16>, vector<2x8x8xf32> -> vector<2x8x8xf32>
    "tpu.trace_stop"() : () -> ()
    %cst_27 = arith.constant 0.353553385 : f32
    %91 = vector.broadcast %cst_27 : f32 to vector<2x8x8xf32>
    %92 = arith.mulf %90, %91 : vector<2x8x8xf32>
    %cst_28 = arith.constant dense<0xFF800000> : vector<2x8xf32>
    %93 = vector.multi_reduction <maximumf>, %92, %cst_28 [2] : vector<2x8x8xf32> to vector<2x8xf32>
    %94 = vector.shape_cast %93 : vector<2x8xf32> to vector<2x8x1xf32>
    %95 = vector.broadcast %94 : vector<2x8x1xf32> to vector<2x8x8xf32>
    %96 = arith.subf %92, %95 : vector<2x8x8xf32>
    %97 = math.exp %96 : vector<2x8x8xf32>
    %cst_29 = arith.constant dense<0.000000e+00> : vector<2x8xf32>
    %98 = vector.multi_reduction <add>, %97, %cst_29 [2] : vector<2x8x8xf32> to vector<2x8xf32>
    %99 = vector.shape_cast %98 : vector<2x8xf32> to vector<2x8x1xf32>
    %100 = tpu.reciprocal %99 {approx = true} : vector<2x8x1xf32> -> vector<2x8x1xf32>
    %101 = vector.broadcast %100 : vector<2x8x1xf32> to vector<2x8x8xf32>
    %102 = arith.mulf %97, %101 : vector<2x8x8xf32>
    %103 = arith.truncf %102 : vector<2x8x8xf32> to vector<2x8x8xbf16>
    %104 = arith.truncf %87 : vector<2x8x8xf32> to vector<2x8x8xbf16>
    "tpu.trace_start"() <{level = 10 : i32, message = "bij,bjd->bid"}> : () -> ()
    %cst_30 = arith.constant dense<0.000000e+00> : vector<2x8x8xf32>
    %105 = tpu.matmul %103, %104, %cst_30 {dimension_numbers = #tpu.dot_dimension_numbers<[2], [1], [1], [2], [0, 0, 0, 1, 1, 2], [0], [0]>} : vector<2x8x8xbf16>, vector<2x8x8xbf16>, vector<2x8x8xf32> -> vector<2x8x8xf32>
    "tpu.trace_stop"() : () -> ()
    %106 = vector.shape_cast %105 : vector<2x8x8xf32> to vector<16x8xf32>
    %107 = vector.extract_strided_slice %31 {offsets = [0, 24], sizes = [16, 8], strides = [1, 1]} : vector<16x96xf32> to vector<16x8xf32>
    %108 = vector.shape_cast %107 : vector<16x8xf32> to vector<2x8x8xf32>
    %109 = vector.extract_strided_slice %31 {offsets = [0, 56], sizes = [16, 8], strides = [1, 1]} : vector<16x96xf32> to vector<16x8xf32>
    %110 = vector.shape_cast %109 : vector<16x8xf32> to vector<2x8x8xf32>
    %111 = vector.extract_strided_slice %31 {offsets = [0, 88], sizes = [16, 8], strides = [1, 1]} : vector<16x96xf32> to vector<16x8xf32>
    %112 = vector.shape_cast %111 : vector<16x8xf32> to vector<2x8x8xf32>
    %113 = arith.truncf %108 : vector<2x8x8xf32> to vector<2x8x8xbf16>
    %114 = arith.truncf %110 : vector<2x8x8xf32> to vector<2x8x8xbf16>
    "tpu.trace_start"() <{level = 10 : i32, message = "bid,bjd->bij"}> : () -> ()
    %cst_31 = arith.constant dense<0.000000e+00> : vector<2x8x8xf32>
    %115 = tpu.matmul %113, %114, %cst_31 {dimension_numbers = #tpu.dot_dimension_numbers<[2], [2], [1], [1], [0, 0, 0, 1, 1, 1], [0], [0]>} : vector<2x8x8xbf16>, vector<2x8x8xbf16>, vector<2x8x8xf32> -> vector<2x8x8xf32>
    "tpu.trace_stop"() : () -> ()
    %cst_32 = arith.constant 0.353553385 : f32
    %116 = vector.broadcast %cst_32 : f32 to vector<2x8x8xf32>
    %117 = arith.mulf %115, %116 : vector<2x8x8xf32>
    %cst_33 = arith.constant dense<0xFF800000> : vector<2x8xf32>
    %118 = vector.multi_reduction <maximumf>, %117, %cst_33 [2] : vector<2x8x8xf32> to vector<2x8xf32>
    %119 = vector.shape_cast %118 : vector<2x8xf32> to vector<2x8x1xf32>
    %120 = vector.broadcast %119 : vector<2x8x1xf32> to vector<2x8x8xf32>
    %121 = arith.subf %117, %120 : vector<2x8x8xf32>
    %122 = math.exp %121 : vector<2x8x8xf32>
    %cst_34 = arith.constant dense<0.000000e+00> : vector<2x8xf32>
    %123 = vector.multi_reduction <add>, %122, %cst_34 [2] : vector<2x8x8xf32> to vector<2x8xf32>
    %124 = vector.shape_cast %123 : vector<2x8xf32> to vector<2x8x1xf32>
    %125 = tpu.reciprocal %124 {approx = true} : vector<2x8x1xf32> -> vector<2x8x1xf32>
    %126 = vector.broadcast %125 : vector<2x8x1xf32> to vector<2x8x8xf32>
    %127 = arith.mulf %122, %126 : vector<2x8x8xf32>
    %128 = arith.truncf %127 : vector<2x8x8xf32> to vector<2x8x8xbf16>
    %129 = arith.truncf %112 : vector<2x8x8xf32> to vector<2x8x8xbf16>
    "tpu.trace_start"() <{level = 10 : i32, message = "bij,bjd->bid"}> : () -> ()
    %cst_35 = arith.constant dense<0.000000e+00> : vector<2x8x8xf32>
    %130 = tpu.matmul %128, %129, %cst_35 {dimension_numbers = #tpu.dot_dimension_numbers<[2], [1], [1], [2], [0, 0, 0, 1, 1, 2], [0], [0]>} : vector<2x8x8xbf16>, vector<2x8x8xbf16>, vector<2x8x8xf32> -> vector<2x8x8xf32>
    "tpu.trace_stop"() : () -> ()
    %131 = vector.shape_cast %130 : vector<2x8x8xf32> to vector<16x8xf32>
    %132 = tpu.concatenate %56, %81, %106, %131 in 1 : vector<16x8xf32>, vector<16x8xf32>, vector<16x8xf32>, vector<16x8xf32> -> vector<16x32xf32>
    %133 = arith.truncf %132 : vector<16x32xf32> to vector<16x32xbf16>
    %c0_36 = arith.constant 0 : index
    %c0_37 = arith.constant 0 : index
    %c0_38 = arith.constant 0 : index
    %134 = vector.load %arg6[%c0_36, %c0_37, %c0_38] : memref<1x32x32xbf16, #tpu.memory_space<vmem>>, vector<1x32x32xbf16>
    %135 = vector.shape_cast %134 : vector<1x32x32xbf16> to vector<32x32xbf16>
    %cst_39 = arith.constant dense<0.000000e+00> : vector<16x32xf32>
    %136 = tpu.matmul %133, %135, %cst_39 {dimension_numbers = #tpu.dot_dimension_numbers<[1], [0], [0], [1], [0, 0, 1, 1], [], []>} : vector<16x32xbf16>, vector<32x32xbf16>, vector<16x32xf32> -> vector<16x32xf32>
    %137 = arith.addf %3, %136 : vector<16x32xf32>
    %c0_40 = arith.constant 0 : index
    %c0_41 = arith.constant 0 : index
    %c0_42 = arith.constant 0 : index
    %138 = vector.load %arg7[%c0_40, %c0_41, %c0_42] : memref<1x1x32xf32, #tpu.memory_space<vmem>>, vector<1x1x32xf32>
    %139 = vector.shape_cast %138 : vector<1x1x32xf32> to vector<1x32xf32>
    %140 = vector.broadcast %139 : vector<1x32xf32> to vector<16x32xf32>
    %141 = arith.addf %137, %140 : vector<16x32xf32>
    %c0_43 = arith.constant 0 : index
    %c0_44 = arith.constant 0 : index
    %c0_45 = arith.constant 0 : index
    %142 = vector.load %arg8[%c0_43, %c0_44, %c0_45] : memref<1x1x32xf32, #tpu.memory_space<vmem>>, vector<1x1x32xf32>
    %143 = vector.shape_cast %142 : vector<1x1x32xf32> to vector<1x32xf32>
    %c0_46 = arith.constant 0 : index
    %c0_47 = arith.constant 0 : index
    %c0_48 = arith.constant 0 : index
    %144 = vector.load %arg9[%c0_46, %c0_47, %c0_48] : memref<1x1x32xf32, #tpu.memory_space<vmem>>, vector<1x1x32xf32>
    %145 = vector.shape_cast %144 : vector<1x1x32xf32> to vector<1x32xf32>
    %cst_49 = arith.constant dense<0.000000e+00> : vector<16xf32>
    %146 = vector.multi_reduction <add>, %141, %cst_49 [1] : vector<16x32xf32> to vector<16xf32>
    %147 = vector.shape_cast %146 : vector<16xf32> to vector<16x1xf32>
    %cst_50 = arith.constant 3.200000e+01 : f32
    %148 = vector.broadcast %cst_50 : f32 to vector<16x1xf32>
    %149 = arith.divf %147, %148 : vector<16x1xf32>
    %150 = vector.broadcast %149 : vector<16x1xf32> to vector<16x32xf32>
    %151 = arith.subf %141, %150 : vector<16x32xf32>
    %152 = arith.mulf %151, %151 : vector<16x32xf32>
    %cst_51 = arith.constant dense<0.000000e+00> : vector<16xf32>
    %153 = vector.multi_reduction <add>, %152, %cst_51 [1] : vector<16x32xf32> to vector<16xf32>
    %154 = vector.shape_cast %153 : vector<16xf32> to vector<16x1xf32>
    %cst_52 = arith.constant 3.200000e+01 : f32
    %155 = vector.broadcast %cst_52 : f32 to vector<16x1xf32>
    %156 = arith.divf %154, %155 : vector<16x1xf32>
    %cst_53 = arith.constant 9.99999974E-6 : f32
    %157 = vector.broadcast %cst_53 : f32 to vector<16x1xf32>
    %158 = arith.addf %156, %157 : vector<16x1xf32>
    %159 = math.rsqrt %158 : vector<16x1xf32>
    %160 = vector.broadcast %159 : vector<16x1xf32> to vector<16x32xf32>
    %161 = arith.mulf %151, %160 : vector<16x32xf32>
    %162 = vector.broadcast %143 : vector<1x32xf32> to vector<16x32xf32>
    %163 = arith.mulf %161, %162 : vector<16x32xf32>
    %164 = vector.broadcast %145 : vector<1x32xf32> to vector<16x32xf32>
    %165 = arith.addf %163, %164 : vector<16x32xf32>
    %166 = arith.truncf %165 : vector<16x32xf32> to vector<16x32xbf16>
    %c0_54 = arith.constant 0 : index
    %c0_55 = arith.constant 0 : index
    %c0_56 = arith.constant 0 : index
    %167 = vector.load %arg10[%c0_54, %c0_55, %c0_56] : memref<1x32x64xbf16, #tpu.memory_space<vmem>>, vector<1x32x64xbf16>
    %168 = vector.shape_cast %167 : vector<1x32x64xbf16> to vector<32x64xbf16>
    %cst_57 = arith.constant dense<0.000000e+00> : vector<16x64xf32>
    %169 = tpu.matmul %166, %168, %cst_57 {dimension_numbers = #tpu.dot_dimension_numbers<[1], [0], [0], [1], [0, 0, 1, 1], [], []>} : vector<16x32xbf16>, vector<32x64xbf16>, vector<16x64xf32> -> vector<16x64xf32>
    %c0_58 = arith.constant 0 : index
    %c0_59 = arith.constant 0 : index
    %c0_60 = arith.constant 0 : index
    %170 = vector.load %arg11[%c0_58, %c0_59, %c0_60] : memref<1x1x64xf32, #tpu.memory_space<vmem>>, vector<1x1x64xf32>
    %171 = vector.shape_cast %170 : vector<1x1x64xf32> to vector<1x64xf32>
    %172 = vector.broadcast %171 : vector<1x64xf32> to vector<16x64xf32>
    %173 = arith.addf %169, %172 : vector<16x64xf32>
    %cst_61 = arith.constant 5.000000e-01 : f32
    %174 = vector.broadcast %cst_61 : f32 to vector<16x64xf32>
    %175 = arith.mulf %174, %173 : vector<16x64xf32>
    %cst_62 = arith.constant 4.471500e-02 : f32
    %176 = vector.broadcast %cst_62 : f32 to vector<16x64xf32>
    %177 = arith.mulf %176, %173 : vector<16x64xf32>
    %178 = arith.mulf %177, %173 : vector<16x64xf32>
    %179 = arith.mulf %178, %173 : vector<16x64xf32>
    %180 = arith.addf %173, %179 : vector<16x64xf32>
    %cst_63 = arith.constant 0.797884583 : f32
    %181 = vector.broadcast %cst_63 : f32 to vector<16x64xf32>
    %182 = arith.mulf %181, %180 : vector<16x64xf32>
    %183 = math.tanh %182 : vector<16x64xf32>
    %cst_64 = arith.constant 1.000000e+00 : f32
    %184 = vector.broadcast %cst_64 : f32 to vector<16x64xf32>
    %185 = arith.addf %184, %183 : vector<16x64xf32>
    %186 = arith.mulf %175, %185 : vector<16x64xf32>
    %187 = arith.truncf %186 : vector<16x64xf32> to vector<16x64xbf16>
    %c0_65 = arith.constant 0 : index
    %c0_66 = arith.constant 0 : index
    %c0_67 = arith.constant 0 : index
    %188 = vector.load %arg12[%c0_65, %c0_66, %c0_67] : memref<1x64x32xbf16, #tpu.memory_space<vmem>>, vector<1x64x32xbf16>
    %189 = vector.shape_cast %188 : vector<1x64x32xbf16> to vector<64x32xbf16>
    %cst_68 = arith.constant dense<0.000000e+00> : vector<16x32xf32>
    %190 = tpu.matmul %187, %189, %cst_68 {dimension_numbers = #tpu.dot_dimension_numbers<[1], [0], [0], [1], [0, 0, 1, 1], [], []>} : vector<16x64xbf16>, vector<64x32xbf16>, vector<16x32xf32> -> vector<16x32xf32>
    %c0_69 = arith.constant 0 : index
    %c0_70 = arith.constant 0 : index
    %c0_71 = arith.constant 0 : index
    %191 = vector.load %arg13[%c0_69, %c0_70, %c0_71] : memref<1x1x32xf32, #tpu.memory_space<vmem>>, vector<1x1x32xf32>
    %192 = vector.shape_cast %191 : vector<1x1x32xf32> to vector<1x32xf32>
    %193 = vector.broadcast %192 : vector<1x32xf32> to vector<16x32xf32>
    %194 = arith.addf %190, %193 : vector<16x32xf32>
    %195 = arith.addf %141, %194 : vector<16x32xf32>
    %c0_72 = arith.constant 0 : index
    %c0_73 = arith.constant 0 : index
    %196 = vector.load %arg15[%c0_72, %c0_73] : memref<16x32xf32, #tpu.memory_space<vmem>>, vector<16x32xf32>
    tpu.vector_store %arg15[%c0_72, %c0_73], %195 {strides = array<i32>} : memref<16x32xf32, #tpu.memory_space<vmem>>, vector<16x32xf32>,
    %c1_i32 = arith.constant 1 : i32
    %197 = arith.cmpi eq, %arg1, %c1_i32 : i32
    %198 = arith.extui %197 : i1 to i32
    %c0_i32_74 = arith.constant 0 : i32
    %199 = arith.cmpi ne, %198, %c0_i32_74 : i32
    scf.if %199 {
      %c0_75 = arith.constant 0 : index
      %c0_76 = arith.constant 0 : index
      %200 = vector.load %arg14[%c0_75, %c0_76] : memref<16x32xf32, #tpu.memory_space<vmem>>, vector<16x32xf32>
      tpu.vector_store %arg14[%c0_75, %c0_76], %195 {strides = array<i32>} : memref<16x32xf32, #tpu.memory_space<vmem>>, vector<16x32xf32>,
    } else {
    }
    return
  }
  func.func @transform_0(%arg0: i32, %arg1: i32) -> (i32, i32) {
    %c0_i32 = arith.constant 0 : i32
    %c0_i32_0 = arith.constant 0 : i32
    return %arg0, %c0_i32 : i32, i32
  }
  func.func @transform_1(%arg0: i32, %arg1: i32) -> (i32, i32, i32) {
    %c0_i32 = arith.constant 0 : i32
    %c0_i32_0 = arith.constant 0 : i32
    %c0_i32_1 = arith.constant 0 : i32
    return %arg1, %c0_i32, %c0_i32_0 : i32, i32, i32
  }
  func.func @transform_2(%arg0: i32, %arg1: i32) -> (i32, i32, i32) {
    %c0_i32 = arith.constant 0 : i32
    %c0_i32_0 = arith.constant 0 : i32
    %c0_i32_1 = arith.constant 0 : i32
    return %arg1, %c0_i32, %c0_i32_0 : i32, i32, i32
  }
  func.func @transform_3(%arg0: i32, %arg1: i32) -> (i32, i32, i32) {
    %c0_i32 = arith.constant 0 : i32
    %c0_i32_0 = arith.constant 0 : i32
    %c0_i32_1 = arith.constant 0 : i32
    return %arg1, %c0_i32, %c0_i32_0 : i32, i32, i32
  }
  func.func @transform_4(%arg0: i32, %arg1: i32) -> (i32, i32, i32) {
    %c0_i32 = arith.constant 0 : i32
    %c0_i32_0 = arith.constant 0 : i32
    %c0_i32_1 = arith.constant 0 : i32
    return %arg1, %c0_i32, %c0_i32_0 : i32, i32, i32
  }
  func.func @transform_5(%arg0: i32, %arg1: i32) -> (i32, i32, i32) {
    %c0_i32 = arith.constant 0 : i32
    %c0_i32_0 = arith.constant 0 : i32
    %c0_i32_1 = arith.constant 0 : i32
    return %arg1, %c0_i32, %c0_i32_0 : i32, i32, i32
  }
  func.func @transform_6(%arg0: i32, %arg1: i32) -> (i32, i32, i32) {
    %c0_i32 = arith.constant 0 : i32
    %c0_i32_0 = arith.constant 0 : i32
    %c0_i32_1 = arith.constant 0 : i32
    return %arg1, %c0_i32, %c0_i32_0 : i32, i32, i32
  }
  func.func @transform_7(%arg0: i32, %arg1: i32) -> (i32, i32, i32) {
    %c0_i32 = arith.constant 0 : i32
    %c0_i32_0 = arith.constant 0 : i32
    %c0_i32_1 = arith.constant 0 : i32
    return %arg1, %c0_i32, %c0_i32_0 : i32, i32, i32
  }
  func.func @transform_8(%arg0: i32, %arg1: i32) -> (i32, i32, i32) {
    %c0_i32 = arith.constant 0 : i32
    %c0_i32_0 = arith.constant 0 : i32
    %c0_i32_1 = arith.constant 0 : i32
    return %arg1, %c0_i32, %c0_i32_0 : i32, i32, i32
  }
  func.func @transform_9(%arg0: i32, %arg1: i32) -> (i32, i32, i32) {
    %c0_i32 = arith.constant 0 : i32
    %c0_i32_0 = arith.constant 0 : i32
    %c0_i32_1 = arith.constant 0 : i32
    return %arg1, %c0_i32, %c0_i32_0 : i32, i32, i32
  }
  func.func @transform_10(%arg0: i32, %arg1: i32) -> (i32, i32, i32) {
    %c0_i32 = arith.constant 0 : i32
    %c0_i32_0 = arith.constant 0 : i32
    %c0_i32_1 = arith.constant 0 : i32
    return %arg1, %c0_i32, %c0_i32_0 : i32, i32, i32
  }
  func.func @transform_11(%arg0: i32, %arg1: i32) -> (i32, i32, i32) {
    %c0_i32 = arith.constant 0 : i32
    %c0_i32_0 = arith.constant 0 : i32
    %c0_i32_1 = arith.constant 0 : i32
    return %arg1, %c0_i32, %c0_i32_0 : i32, i32, i32
  }
  func.func @transform_12(%arg0: i32, %arg1: i32) -> (i32, i32) {
    %c0_i32 = arith.constant 0 : i32
    %c0_i32_0 = arith.constant 0 : i32
    return %arg0, %c0_i32 : i32, i32
  }
}

</mosaic_0001>

<llo_original>
// kernel: tpu_custom_call.1
$region0: #{tpu_custom_call.1}
  #allocation0 [shape = 'u32[]', space=smem, size = 0x4, offset = 0x4, fixed_abs, tag = 'smem constant byte address 0x4 - core index']
  #allocation1 [shape = 'u32[144,128]{1,0:T(1,128)}', space=vmem, size = 0x12000, scoped, tag = 'internal scratch']
  #allocation2 [shape = 'f32[16,32]{1,0:T(8,128)}', space=vmem, size = 0x2000, scoped, tag = 'scratch operand']
  %s0 = inlined_call_operand.vmem [shape: f32[32,32], index: 0, kind: input, shape index: {}]
  %s1 = inlined_call_operand.hbm [shape: f32[2,1,32], index: 1, kind: input, shape index: {}]
  %s2 = inlined_call_operand.vmem [shape: f32[2,1,32], index: 2, kind: input, shape index: {}]
  %s3 = inlined_call_operand.vmem [shape: bf16[2,32,96], index: 3, kind: input, shape index: {}]
  %s4 = inlined_call_operand.vmem [shape: bf16[2,32,32], index: 4, kind: input, shape index: {}]
  %s5 = inlined_call_operand.vmem [shape: f32[2,1,32], index: 5, kind: input, shape index: {}]
  %s6 = inlined_call_operand.vmem [shape: f32[2,1,32], index: 6, kind: input, shape index: {}]
  %s7 = inlined_call_operand.vmem [shape: f32[2,1,32], index: 7, kind: input, shape index: {}]
  %s8 = inlined_call_operand.hbm [shape: bf16[2,32,64], index: 8, kind: input, shape index: {}]
  %s9 = inlined_call_operand.vmem [shape: f32[2,1,64], index: 9, kind: input, shape index: {}]
  %s10 = inlined_call_operand.vmem [shape: bf16[2,64,32], index: 10, kind: input, shape index: {}]
  %s11 = inlined_call_operand.vmem [shape: f32[2,1,32], index: 11, kind: input, shape index: {}]
  %s12 = inlined_call_operand.hbm [shape: f32[32,32], index: 12, kind: output, shape index: {}]
  %s13 = sld [smem:[#allocation0]]
  $region97: #{tpu_custom_call.1} parent=0
    _
  %s15 = ssub.s32 1, %s13
  %s16 = scalar_select 0, %s15, %s13
  $region1: #{tpu_custom_call.1} parent=0
    #allocation3 [shape = 'u8[1024]{0}', space=vmem, size = 0x400, scoped, tag = 'input window, operand 1']
    #allocation4 [shape = 's32[2]{0}', space=sflag, size = 0x8, scoped, tag = 'scoped memory for tpu_custom_call.1']
    #allocation5 [shape = 's32[2]{0}', space=sflag, size = 0x8, scoped, tag = 'scoped memory for tpu_custom_call.1']
    #allocation6 [shape = 'u8[16384]{0}', space=vmem, size = 0x4000, scoped, tag = 'input window, operand 8']
    #allocation7 [shape = 's32[2]{0}', space=sflag, size = 0x8, scoped, tag = 'scoped memory for tpu_custom_call.1']
    #allocation8 [shape = 'u8[16384]{0}', space=vmem, size = 0x4000, scoped, tag = 'output window, operand 0']
    %17 = vsyncpa [#allocation4], 0
    %s18 = scalar_lea.sflag [#allocation4], 1
    %19 = vsyncpa %s18, 0
    %20 = vsyncpa [#allocation7], 0
    %s21 = scalar_lea.sflag [#allocation7], 1
    %22 = vsyncpa %s21, 0
    %23 = vsyncpa [#allocation5], 0
    %s24 = scalar_lea.sflag [#allocation5], 1
    %25 = vsyncpa %s24, 0
    loop: start=0, step=1, limit=6
    $region2: #{tpu_custom_call.1} parent=1 // loop_pre_header
      _
    $region3: #{tpu_custom_call.1} parent=1 // loop_header
      %s27 = sphi 0, %s31
      %p28 = scmp.ge.s32.totalorder %s27, 6
      %s34 = sphi 0, %s46
      %s35 = sphi 0, %s42
      %s36 = sphi 0, %s34
      %s37 = sphi 0, %s35
      %s38 = sphi 0, %s36
      %s39 = sphi 0, %s37
      %s49 = sphi 0, %s51
      %s52 = sphi 0, %s49
      %s53 = sphi 0, %s52
      %s69 = sphi 0, %s53
      %s75 = sphi 0, %s77
      %s78 = sphi 0, %s75
      %s79 = sphi 0, %s78
      %s95 = sphi 0, %s79
      %s101 = sphi 0, %s103
      %s104 = sphi 0, %s101
      %s105 = sphi 0, %s104
      %s121 = sphi 0, %s105
      %s127 = sphi 0, %s129
      %s130 = sphi 0, %s127
      %s131 = sphi 0, %s130
      %s147 = sphi 0, %s131
      %s153 = sphi 0, %s155
      %s156 = sphi 0, %s153
      %s157 = sphi 0, %s156
      %s173 = sphi 0, %s157
      %s179 = sphi 0, %s181
      %s182 = sphi 0, %s179
      %s183 = sphi 0, %s182
      %s199 = sphi 0, %s183
      %s205 = sphi 0, %s207
      %s208 = sphi 0, %s205
      %s209 = sphi 0, %s208
      %s225 = sphi 0, %s209
      %s231 = sphi 0, %s233
      %s234 = sphi 0, %s231
      %s235 = sphi 0, %s234
      %s251 = sphi 0, %s235
      %s257 = sphi 0, %s259
      %s260 = sphi 0, %s257
      %s261 = sphi 0, %s260
      %s277 = sphi 0, %s261
      %s283 = sphi 0, %s285
      %s286 = sphi 0, %s283
      %s287 = sphi 0, %s286
      %s303 = sphi 0, %s287
      %s309 = sphi 0, %s311
      %s312 = sphi 0, %s309
      %s313 = sphi 0, %s312
      %s329 = sphi 0, %s313
      %s335 = sphi 0, %s337
      %s338 = sphi 0, %s335
      %s339 = sphi 0, %s338
      %s355 = sphi 0, %s339
      %s361 = sphi 0, %s363
      %s364 = sphi 0, %s361
      %s365 = sphi 0, %s364
      %s381 = sphi 0, %s365
    $region4: #{tpu_custom_call.1} parent=1 // loop_header_branch
      %30 = sbr.rel (%p28) target = $region8
    $region5: #{tpu_custom_call.1} parent=1 // loop_body
      %s32 = ssub.s32 %s27, 1
      %s33 = ssub.s32 %s27, 2
      %s40 = sadd.s32 1, %s35
      %p41 = scmp.ge.s32.totalorder %s40, 2
      %s42 = scalar_select %p41, 0, %s40
      %s43 = sadd.s32 1, %s34
      %s44 = scalar_select %p41, %s43, %s34
      %p45 = scmp.ge.s32.totalorder %s44, 2
      %s46 = scalar_select %p45, 0, %s44
      %s47 = ssub.s32 %s34, %s46
      %p48 = scmp.eq.s32.totalorder %s47, 0
      %s50 = sadd.s32 %s49, 1
      %s51 = scalar_select %p48, %s49, %s50
      %p54 = pneg %p48
      %p55 = scmp.eq.s32.totalorder %s27, 3
      %p56 = por %p54, %p55
      %p57 = scmp.ne.s32.totalorder %s49, %s52
      %p58 = scmp.eq.s32.totalorder %s27, 0
      %p59 = por %p57, %p58
      %p60 = scmp.ne.s32.totalorder %s49, %s52
      %p61 = scmp.eq.s32.totalorder %s32, 3
      %p62 = por %p60, %p61
      %p63 = scmp.ne.s32.totalorder %s52, %s53
      %p64 = scmp.eq.s32.totalorder %s32, 0
      %p65 = por %p63, %p64
      %p66 = scmp.ne.s32.totalorder %s52, %s53
      %p67 = scmp.eq.s32.totalorder %s33, 3
      %p68 = por %p66, %p67
      %p70 = scmp.ne.s32.totalorder %s53, %s69
      %p71 = scmp.eq.s32.totalorder %s33, 0
      %p72 = por %p70, %p71
      %s73 = ssub.s32 %s35, %s42
      %p74 = scmp.eq.s32.totalorder %s73, 0
      %s76 = sadd.s32 %s75, 1
      %s77 = scalar_select %p74, %s75, %s76
      %p80 = pneg %p74
      %p81 = scmp.eq.s32.totalorder %s27, 3
      %p82 = por %p80, %p81
      %p83 = scmp.ne.s32.totalorder %s75, %s78
      %p84 = scmp.eq.s32.totalorder %s27, 0
      %p85 = por %p83, %p84
      %p86 = scmp.ne.s32.totalorder %s75, %s78
      %p87 = scmp.eq.s32.totalorder %s32, 3
      %p88 = por %p86, %p87
      %p89 = scmp.ne.s32.totalorder %s78, %s79
      %p90 = scmp.eq.s32.totalorder %s32, 0
      %p91 = por %p89, %p90
      %p92 = scmp.ne.s32.totalorder %s78, %s79
      %p93 = scmp.eq.s32.totalorder %s33, 3
      %p94 = por %p92, %p93
      %p96 = scmp.ne.s32.totalorder %s79, %s95
      %p97 = scmp.eq.s32.totalorder %s33, 0
      %p98 = por %p96, %p97
      %s99 = ssub.s32 %s35, %s42
      %p100 = scmp.eq.s32.totalorder %s99, 0
      %s102 = sadd.s32 %s101, 1
      %s103 = scalar_select %p100, %s101, %s102
      %p106 = pneg %p100
      %p107 = scmp.eq.s32.totalorder %s27, 3
      %p108 = por %p106, %p107
      %p109 = scmp.ne.s32.totalorder %s101, %s104
      %p110 = scmp.eq.s32.totalorder %s27, 0
      %p111 = por %p109, %p110
      %p112 = scmp.ne.s32.totalorder %s101, %s104
      %p113 = scmp.eq.s32.totalorder %s32, 3
      %p114 = por %p112, %p113
      %p115 = scmp.ne.s32.totalorder %s104, %s105
      %p116 = scmp.eq.s32.totalorder %s32, 0
      %p117 = por %p115, %p116
      %p118 = scmp.ne.s32.totalorder %s104, %s105
      %p119 = scmp.eq.s32.totalorder %s33, 3
      %p120 = por %p118, %p119
      %p122 = scmp.ne.s32.totalorder %s105, %s121
      %p123 = scmp.eq.s32.totalorder %s33, 0
      %p124 = por %p122, %p123
      %s125 = ssub.s32 %s35, %s42
      %p126 = scmp.eq.s32.totalorder %s125, 0
      %s128 = sadd.s32 %s127, 1
      %s129 = scalar_select %p126, %s127, %s128
      %p132 = pneg %p126
      %p133 = scmp.eq.s32.totalorder %s27, 3
      %p134 = por %p132, %p133
      %p135 = scmp.ne.s32.totalorder %s127, %s130
      %p136 = scmp.eq.s32.totalorder %s27, 0
      %p137 = por %p135, %p136
      %p138 = scmp.ne.s32.totalorder %s127, %s130
      %p139 = scmp.eq.s32.totalorder %s32, 3
      %p140 = por %p138, %p139
      %p141 = scmp.ne.s32.totalorder %s130, %s131
      %p142 = scmp.eq.s32.totalorder %s32, 0
      %p143 = por %p141, %p142
      %p144 = scmp.ne.s32.totalorder %s130, %s131
      %p145 = scmp.eq.s32.totalorder %s33, 3
      %p146 = por %p144, %p145
      %p148 = scmp.ne.s32.totalorder %s131, %s147
      %p149 = scmp.eq.s32.totalorder %s33, 0
      %p150 = por %p148, %p149
      %s151 = ssub.s32 %s35, %s42
      %p152 = scmp.eq.s32.totalorder %s151, 0
      %s154 = sadd.s32 %s153, 1
      %s155 = scalar_select %p152, %s153, %s154
      %p158 = pneg %p152
      %p159 = scmp.eq.s32.totalorder %s27, 3
      %p160 = por %p158, %p159
      %p161 = scmp.ne.s32.totalorder %s153, %s156
      %p162 = scmp.eq.s32.totalorder %s27, 0
      %p163 = por %p161, %p162
      %p164 = scmp.ne.s32.totalorder %s153, %s156
      %p165 = scmp.eq.s32.totalorder %s32, 3
      %p166 = por %p164, %p165
      %p167 = scmp.ne.s32.totalorder %s156, %s157
      %p168 = scmp.eq.s32.totalorder %s32, 0
      %p169 = por %p167, %p168
      %p170 = scmp.ne.s32.totalorder %s156, %s157
      %p171 = scmp.eq.s32.totalorder %s33, 3
      %p172 = por %p170, %p171
      %p174 = scmp.ne.s32.totalorder %s157, %s173
      %p175 = scmp.eq.s32.totalorder %s33, 0
      %p176 = por %p174, %p175
      %s177 = ssub.s32 %s35, %s42
      %p178 = scmp.eq.s32.totalorder %s177, 0
      %s180 = sadd.s32 %s179, 1
      %s181 = scalar_select %p178, %s179, %s180
      %p184 = pneg %p178
      %p185 = scmp.eq.s32.totalorder %s27, 3
      %p186 = por %p184, %p185
      %p187 = scmp.ne.s32.totalorder %s179, %s182
      %p188 = scmp.eq.s32.totalorder %s27, 0
      %p189 = por %p187, %p188
      %p190 = scmp.ne.s32.totalorder %s179, %s182
      %p191 = scmp.eq.s32.totalorder %s32, 3
      %p192 = por %p190, %p191
      %p193 = scmp.ne.s32.totalorder %s182, %s183
      %p194 = scmp.eq.s32.totalorder %s32, 0
      %p195 = por %p193, %p194
      %p196 = scmp.ne.s32.totalorder %s182, %s183
      %p197 = scmp.eq.s32.totalorder %s33, 3
      %p198 = por %p196, %p197
      %p200 = scmp.ne.s32.totalorder %s183, %s199
      %p201 = scmp.eq.s32.totalorder %s33, 0
      %p202 = por %p200, %p201
      %s203 = ssub.s32 %s35, %s42
      %p204 = scmp.eq.s32.totalorder %s203, 0
      %s206 = sadd.s32 %s205, 1
      %s207 = scalar_select %p204, %s205, %s206
      %p210 = pneg %p204
      %p211 = scmp.eq.s32.totalorder %s27, 3
      %p212 = por %p210, %p211
      %p213 = scmp.ne.s32.totalorder %s205, %s208
      %p214 = scmp.eq.s32.totalorder %s27, 0
      %p215 = por %p213, %p214
      %p216 = scmp.ne.s32.totalorder %s205, %s208
      %p217 = scmp.eq.s32.totalorder %s32, 3
      %p218 = por %p216, %p217
      %p219 = scmp.ne.s32.totalorder %s208, %s209
      %p220 = scmp.eq.s32.totalorder %s32, 0
      %p221 = por %p219, %p220
      %p222 = scmp.ne.s32.totalorder %s208, %s209
      %p223 = scmp.eq.s32.totalorder %s33, 3
      %p224 = por %p222, %p223
      %p226 = scmp.ne.s32.totalorder %s209, %s225
      %p227 = scmp.eq.s32.totalorder %s33, 0
      %p228 = por %p226, %p227
      %s229 = ssub.s32 %s35, %s42
      %p230 = scmp.eq.s32.totalorder %s229, 0
      %s232 = sadd.s32 %s231, 1
      %s233 = scalar_select %p230, %s231, %s232
      %p236 = pneg %p230
      %p237 = scmp.eq.s32.totalorder %s27, 3
      %p238 = por %p236, %p237
      %p239 = scmp.ne.s32.totalorder %s231, %s234
      %p240 = scmp.eq.s32.totalorder %s27, 0
      %p241 = por %p239, %p240
      %p242 = scmp.ne.s32.totalorder %s231, %s234
      %p243 = scmp.eq.s32.totalorder %s32, 3
      %p244 = por %p242, %p243
      %p245 = scmp.ne.s32.totalorder %s234, %s235
      %p246 = scmp.eq.s32.totalorder %s32, 0
      %p247 = por %p245, %p246
      %p248 = scmp.ne.s32.totalorder %s234, %s235
      %p249 = scmp.eq.s32.totalorder %s33, 3
      %p250 = por %p248, %p249
      %p252 = scmp.ne.s32.totalorder %s235, %s251
      %p253 = scmp.eq.s32.totalorder %s33, 0
      %p254 = por %p252, %p253
      %s255 = ssub.s32 %s35, %s42
      %p256 = scmp.eq.s32.totalorder %s255, 0
      %s258 = sadd.s32 %s257, 1
      %s259 = scalar_select %p256, %s257, %s258
      %p262 = pneg %p256
      %p263 = scmp.eq.s32.totalorder %s27, 3
      %p264 = por %p262, %p263
      %p265 = scmp.ne.s32.totalorder %s257, %s260
      %p266 = scmp.eq.s32.totalorder %s27, 0
      %p267 = por %p265, %p266
      %p268 = scmp.ne.s32.totalorder %s257, %s260
      %p269 = scmp.eq.s32.totalorder %s32, 3
      %p270 = por %p268, %p269
      %p271 = scmp.ne.s32.totalorder %s260, %s261
      %p272 = scmp.eq.s32.totalorder %s32, 0
      %p273 = por %p271, %p272
      %p274 = scmp.ne.s32.totalorder %s260, %s261
      %p275 = scmp.eq.s32.totalorder %s33, 3
      %p276 = por %p274, %p275
      %p278 = scmp.ne.s32.totalorder %s261, %s277
      %p279 = scmp.eq.s32.totalorder %s33, 0
      %p280 = por %p278, %p279
      %s281 = ssub.s32 %s35, %s42
      %p282 = scmp.eq.s32.totalorder %s281, 0
      %s284 = sadd.s32 %s283, 1
      %s285 = scalar_select %p282, %s283, %s284
      %p288 = pneg %p282
      %p289 = scmp.eq.s32.totalorder %s27, 3
      %p290 = por %p288, %p289
      %p291 = scmp.ne.s32.totalorder %s283, %s286
      %p292 = scmp.eq.s32.totalorder %s27, 0
      %p293 = por %p291, %p292
      %p294 = scmp.ne.s32.totalorder %s283, %s286
      %p295 = scmp.eq.s32.totalorder %s32, 3
      %p296 = por %p294, %p295
      %p297 = scmp.ne.s32.totalorder %s286, %s287
      %p298 = scmp.eq.s32.totalorder %s32, 0
      %p299 = por %p297, %p298
      %p300 = scmp.ne.s32.totalorder %s286, %s287
      %p301 = scmp.eq.s32.totalorder %s33, 3
      %p302 = por %p300, %p301
      %p304 = scmp.ne.s32.totalorder %s287, %s303
      %p305 = scmp.eq.s32.totalorder %s33, 0
      %p306 = por %p304, %p305
      %s307 = ssub.s32 %s35, %s42
      %p308 = scmp.eq.s32.totalorder %s307, 0
      %s310 = sadd.s32 %s309, 1
      %s311 = scalar_select %p308, %s309, %s310
      %p314 = pneg %p308
      %p315 = scmp.eq.s32.totalorder %s27, 3
      %p316 = por %p314, %p315
      %p317 = scmp.ne.s32.totalorder %s309, %s312
      %p318 = scmp.eq.s32.totalorder %s27, 0
      %p319 = por %p317, %p318
      %p320 = scmp.ne.s32.totalorder %s309, %s312
      %p321 = scmp.eq.s32.totalorder %s32, 3
      %p322 = por %p320, %p321
      %p323 = scmp.ne.s32.totalorder %s312, %s313
      %p324 = scmp.eq.s32.totalorder %s32, 0
      %p325 = por %p323, %p324
      %p326 = scmp.ne.s32.totalorder %s312, %s313
      %p327 = scmp.eq.s32.totalorder %s33, 3
      %p328 = por %p326, %p327
      %p330 = scmp.ne.s32.totalorder %s313, %s329
      %p331 = scmp.eq.s32.totalorder %s33, 0
      %p332 = por %p330, %p331
      %s333 = ssub.s32 %s35, %s42
      %p334 = scmp.eq.s32.totalorder %s333, 0
      %s336 = sadd.s32 %s335, 1
      %s337 = scalar_select %p334, %s335, %s336
      %p340 = pneg %p334
      %p341 = scmp.eq.s32.totalorder %s27, 3
      %p342 = por %p340, %p341
      %p343 = scmp.ne.s32.totalorder %s335, %s338
      %p344 = scmp.eq.s32.totalorder %s27, 0
      %p345 = por %p343, %p344
      %p346 = scmp.ne.s32.totalorder %s335, %s338
      %p347 = scmp.eq.s32.totalorder %s32, 3
      %p348 = por %p346, %p347
      %p349 = scmp.ne.s32.totalorder %s338, %s339
      %p350 = scmp.eq.s32.totalorder %s32, 0
      %p351 = por %p349, %p350
      %p352 = scmp.ne.s32.totalorder %s338, %s339
      %p353 = scmp.eq.s32.totalorder %s33, 3
      %p354 = por %p352, %p353
      %p356 = scmp.ne.s32.totalorder %s339, %s355
      %p357 = scmp.eq.s32.totalorder %s33, 0
      %p358 = por %p356, %p357
      %s359 = ssub.s32 %s34, %s46
      %p360 = scmp.eq.s32.totalorder %s359, 0
      %s362 = sadd.s32 %s361, 1
      %s363 = scalar_select %p360, %s361, %s362
      %p366 = pneg %p360
      %p367 = scmp.eq.s32.totalorder %s27, 3
      %p368 = por %p366, %p367
      %p369 = scmp.ne.s32.totalorder %s361, %s364
      %p370 = scmp.eq.s32.totalorder %s27, 0
      %p371 = por %p369, %p370
      %p372 = scmp.ne.s32.totalorder %s361, %s364
      %p373 = scmp.eq.s32.totalorder %s32, 3
      %p374 = por %p372, %p373
      %p375 = scmp.ne.s32.totalorder %s364, %s365
      %p376 = scmp.eq.s32.totalorder %s32, 0
      %p377 = por %p375, %p376
      %p378 = scmp.ne.s32.totalorder %s364, %s365
      %p379 = scmp.eq.s32.totalorder %s33, 3
      %p380 = por %p378, %p379
      %p382 = scmp.ne.s32.totalorder %s365, %s381
      %p383 = scmp.eq.s32.totalorder %s33, 0
      %p384 = por %p382, %p383
      %p385 = scmp.le.s32.totalorder 1, %s27
      %p386 = scmp.lt.s32.totalorder %s27, 5
      %p387 = pnand %p385, %p386
      %p388 = pneg %p387
      // Predicated region
      $region9: #{tpu_custom_call.1} parent=5 // pred_check
        _
      $region10: #{tpu_custom_call.1} parent=5 // pred_check_branch
        %390 = sbr.rel (%p387) target = $region12
      $region11: #{tpu_custom_call.1} parent=5 // pred_region
        %s391 = ssub.s32 %s27, 1
      $region12: #{tpu_custom_call.1} parent=5 // pred_fallthru
        _
      %p392 = scmp.lt.s32.totalorder %s27, 4
      // Predicated region
      $region13: #{tpu_custom_call.1} parent=5 // pred_check
        %p393 = pneg %p392
      $region14: #{tpu_custom_call.1} parent=5 // pred_check_branch
        %395 = sbr.rel (%p393) target = $region16
      $region15: #{tpu_custom_call.1} parent=5 // pred_region
        // Predicated region
        $region17: #{tpu_custom_call.1} parent=15 // pred_check
          %p396 = pneg %p59
        $region18: #{tpu_custom_call.1} parent=15 // pred_check_branch
          %398 = sbr.rel (%p396) target = $region20
        $region19: #{tpu_custom_call.1} parent=15 // pred_region
          %s399 = smul.u32 2, %s34
          %p400 = scmp.lt.s32.totalorder %s399, 3
          %s401 = scalar_select %p400, %s399, 3
          %s402 = smul.addr %s401, 8
          %s403 = scalar_lea.vmem %s0, %s402
          %s404 = smul.u32 2, %s34
        $region20: #{tpu_custom_call.1} parent=15 // pred_fallthru
          _
        // Predicated region
        $region21: #{tpu_custom_call.1} parent=15 // pred_check
          %p405 = pneg %p85
        $region22: #{tpu_custom_call.1} parent=15 // pred_check_branch
          %407 = sbr.rel (%p405) target = $region24
        $region23: #{tpu_custom_call.1} parent=15 // pred_region
          %s408 = sand.u32 %s75, 1
          %s409 = scalar_lea.sflag [#allocation4], %s408
          %s410 = sand.u32 %s75, 1
          %s411 = scalar_lea.vmem [#allocation3], %s410
          %s413 = ssub.s32 16, 16
          %414 = vsyncadd %s409, %s413
          %s415 = smul.addr %s35, 16
          %s416 = scalar_lea.hbm %s1, %s415
          %s418 = sshll.u32 %s411, 4
          %s419 = int_to_ptr.vmem [resolvable:$true] %s418
          %421 = dma.hbm_to_vmem [thread:$0]  %s416, 16, %s419, %s409
        $region24: #{tpu_custom_call.1} parent=15 // pred_fallthru
          _
        // Predicated region
        $region25: #{tpu_custom_call.1} parent=15 // pred_check
          %p422 = pneg %p111
        $region26: #{tpu_custom_call.1} parent=15 // pred_check_branch
          %424 = sbr.rel (%p422) target = $region28
        $region27: #{tpu_custom_call.1} parent=15 // pred_region
          %p425 = scmp.lt.s32.totalorder %s35, 1
          %s426 = scalar_select %p425, %s35, 1
          %s427 = scalar_lea.vmem %s2, %s426
        $region28: #{tpu_custom_call.1} parent=15 // pred_fallthru
          _
        // Predicated region
        $region29: #{tpu_custom_call.1} parent=15 // pred_check
          %p428 = pneg %p137
        $region30: #{tpu_custom_call.1} parent=15 // pred_check_branch
          %430 = sbr.rel (%p428) target = $region32
        $region31: #{tpu_custom_call.1} parent=15 // pred_region
          %p431 = scmp.lt.s32.totalorder %s35, 1
          %s432 = scalar_select %p431, %s35, 1
          %s433 = smul.addr %s432, 4
          %s434 = smul.addr %s433, 4
          %s435 = scalar_lea.vmem %s3, %s434
        $region32: #{tpu_custom_call.1} parent=15 // pred_fallthru
          _
        // Predicated region
        $region33: #{tpu_custom_call.1} parent=15 // pred_check
          %p436 = pneg %p163
        $region34: #{tpu_custom_call.1} parent=15 // pred_check_branch
          %438 = sbr.rel (%p436) target = $region36
        $region35: #{tpu_custom_call.1} parent=15 // pred_region
          %p439 = scmp.lt.s32.totalorder %s35, 1
          %s440 = scalar_select %p439, %s35, 1
          %s441 = smul.addr %s440, 4
          %s442 = smul.addr %s441, 4
          %s443 = scalar_lea.vmem %s4, %s442
        $region36: #{tpu_custom_call.1} parent=15 // pred_fallthru
          _
        // Predicated region
        $region37: #{tpu_custom_call.1} parent=15 // pred_check
          %p444 = pneg %p189
        $region38: #{tpu_custom_call.1} parent=15 // pred_check_branch
          %446 = sbr.rel (%p444) target = $region40
        $region39: #{tpu_custom_call.1} parent=15 // pred_region
          %p447 = scmp.lt.s32.totalorder %s35, 1
          %s448 = scalar_select %p447, %s35, 1
          %s449 = scalar_lea.vmem %s5, %s448
        $region40: #{tpu_custom_call.1} parent=15 // pred_fallthru
          _
        // Predicated region
        $region41: #{tpu_custom_call.1} parent=15 // pred_check
          %p450 = pneg %p215
        $region42: #{tpu_custom_call.1} parent=15 // pred_check_branch
          %452 = sbr.rel (%p450) target = $region44
        $region43: #{tpu_custom_call.1} parent=15 // pred_region
          %p453 = scmp.lt.s32.totalorder %s35, 1
          %s454 = scalar_select %p453, %s35, 1
          %s455 = scalar_lea.vmem %s6, %s454
        $region44: #{tpu_custom_call.1} parent=15 // pred_fallthru
          _
        // Predicated region
        $region45: #{tpu_custom_call.1} parent=15 // pred_check
          %p456 = pneg %p241
        $region46: #{tpu_custom_call.1} parent=15 // pred_check_branch
          %458 = sbr.rel (%p456) target = $region48
        $region47: #{tpu_custom_call.1} parent=15 // pred_region
          %p459 = scmp.lt.s32.totalorder %s35, 1
          %s460 = scalar_select %p459, %s35, 1
          %s461 = scalar_lea.vmem %s7, %s460
        $region48: #{tpu_custom_call.1} parent=15 // pred_fallthru
          _
        // Predicated region
        $region49: #{tpu_custom_call.1} parent=15 // pred_check
          %p462 = pneg %p267
        $region50: #{tpu_custom_call.1} parent=15 // pred_check_branch
          %464 = sbr.rel (%p462) target = $region52
        $region51: #{tpu_custom_call.1} parent=15 // pred_region
          %s465 = sand.u32 %s257, 1
          %s466 = scalar_lea.sflag [#allocation7], %s465
          %s467 = sand.u32 %s257, 1
          %s468 = smul.addr %s467, 16
          %s469 = scalar_lea.vmem [#allocation6], %s468
          %s471 = ssub.s32 256, 256
          %472 = vsyncadd %s466, %s471
          %s473 = smul.addr %s35, 4
          %s474 = smul.addr %s473, 64
          %s475 = scalar_lea.hbm %s8, %s474
          %s476 = sshll.u32 %s469, 4
          %s477 = int_to_ptr.vmem [resolvable:$true] %s476
          %482 = dma.hbm_to_vmem [thread:$0]  %s475, 256, %s477, %s466, 64, 64, 4
        $region52: #{tpu_custom_call.1} parent=15 // pred_fallthru
          _
        // Predicated region
        $region53: #{tpu_custom_call.1} parent=15 // pred_check
          %p483 = pneg %p293
        $region54: #{tpu_custom_call.1} parent=15 // pred_check_branch
          %485 = sbr.rel (%p483) target = $region56
        $region55: #{tpu_custom_call.1} parent=15 // pred_region
          %p486 = scmp.lt.s32.totalorder %s35, 1
          %s487 = scalar_select %p486, %s35, 1
          %s488 = scalar_lea.vmem %s9, %s487
        $region56: #{tpu_custom_call.1} parent=15 // pred_fallthru
          _
        // Predicated region
        $region57: #{tpu_custom_call.1} parent=15 // pred_check
          %p489 = pneg %p319
        $region58: #{tpu_custom_call.1} parent=15 // pred_check_branch
          %491 = sbr.rel (%p489) target = $region60
        $region59: #{tpu_custom_call.1} parent=15 // pred_region
          %p492 = scmp.lt.s32.totalorder %s35, 1
          %s493 = scalar_select %p492, %s35, 1
          %s494 = smul.addr %s493, 8
          %s495 = smul.addr %s494, 4
          %s496 = scalar_lea.vmem %s10, %s495
        $region60: #{tpu_custom_call.1} parent=15 // pred_fallthru
          _
        // Predicated region
        $region61: #{tpu_custom_call.1} parent=15 // pred_check
          %p497 = pneg %p345
        $region62: #{tpu_custom_call.1} parent=15 // pred_check_branch
          %499 = sbr.rel (%p497) target = $region64
        $region63: #{tpu_custom_call.1} parent=15 // pred_region
          %p500 = scmp.lt.s32.totalorder %s35, 1
          %s501 = scalar_select %p500, %s35, 1
          %s502 = scalar_lea.vmem %s11, %s501
        $region64: #{tpu_custom_call.1} parent=15 // pred_fallthru
          _
      $region16: #{tpu_custom_call.1} parent=5 // pred_fallthru
        _
      %p503 = scmp.le.s32.totalorder 1, %s27
      %p504 = scmp.lt.s32.totalorder %s27, 5
      %p505 = pnand %p503, %p504
      %p506 = pneg %p505
      // Predicated region
      $region65: #{tpu_custom_call.1} parent=5 // pred_check
        _
      $region66: #{tpu_custom_call.1} parent=5 // pred_check_branch
        %508 = sbr.rel (%p505) target = $region68
      $region67: #{tpu_custom_call.1} parent=5 // pred_region
        %s509 = ssub.s32 %s27, 1
        %s510 = sand.u32 %s78, 1
        %s511 = scalar_lea.sflag [#allocation4], %s510
        %s512 = sand.u32 %s78, 1
        %s513 = scalar_lea.vmem [#allocation3], %s512
        // Predicated region
        $region69: #{tpu_custom_call.1} parent=67 // pred_check
          %p514 = pneg %p91
        $region70: #{tpu_custom_call.1} parent=67 // pred_check_branch
          %516 = sbr.rel (%p514) target = $region72
        $region71: #{tpu_custom_call.1} parent=67 // pred_region
          %517 = dma.done %s511, 16
        $region72: #{tpu_custom_call.1} parent=67 // pred_fallthru
          _
        %s518 = sand.u32 %s260, 1
        %s519 = scalar_lea.sflag [#allocation7], %s518
        %s520 = sand.u32 %s260, 1
        %s521 = smul.addr %s520, 16
        %s522 = scalar_lea.vmem [#allocation6], %s521
        // Predicated region
        $region73: #{tpu_custom_call.1} parent=67 // pred_check
          %p523 = pneg %p273
        $region74: #{tpu_custom_call.1} parent=67 // pred_check_branch
          %525 = sbr.rel (%p523) target = $region76
        $region75: #{tpu_custom_call.1} parent=67 // pred_region
          %526 = dma.done %s519, 256
        $region76: #{tpu_custom_call.1} parent=67 // pred_fallthru
          _
        %s527 = smul.u32 2, %s36
        %p528 = scmp.lt.s32.totalorder %s527, 3
        %s529 = scalar_select %p528, %s527, 3
        %s530 = smul.addr %s529, 8
        %s531 = scalar_lea.vmem %s0, %s530
        %p532 = pneg %p65
        %p533 = pneg %p62
        %s534 = sand.u32 %s78, 1
        %s535 = scalar_lea.sflag [#allocation4], %s534
        %s536 = sand.u32 %s78, 1
        %s537 = scalar_lea.vmem [#allocation3], %s536
        %p538 = pneg %p91
        %p539 = pneg %p88
        %p540 = scmp.lt.s32.totalorder %s37, 1
        %s541 = scalar_select %p540, %s37, 1
        %s542 = scalar_lea.vmem %s2, %s541
        %p543 = pneg %p117
        %p544 = pneg %p114
        %p545 = scmp.lt.s32.totalorder %s37, 1
        %s546 = scalar_select %p545, %s37, 1
        %s547 = smul.addr %s546, 4
        %s548 = smul.addr %s547, 4
        %s549 = scalar_lea.vmem %s3, %s548
        %p550 = pneg %p143
        %p551 = pneg %p140
        %p552 = scmp.lt.s32.totalorder %s37, 1
        %s553 = scalar_select %p552, %s37, 1
        %s554 = smul.addr %s553, 4
        %s555 = smul.addr %s554, 4
        %s556 = scalar_lea.vmem %s4, %s555
        %p557 = pneg %p169
        %p558 = pneg %p166
        %p559 = scmp.lt.s32.totalorder %s37, 1
        %s560 = scalar_select %p559, %s37, 1
        %s561 = scalar_lea.vmem %s5, %s560
        %p562 = pneg %p195
        %p563 = pneg %p192
        %p564 = scmp.lt.s32.totalorder %s37, 1
        %s565 = scalar_select %p564, %s37, 1
        %s566 = scalar_lea.vmem %s6, %s565
        %p567 = pneg %p221
        %p568 = pneg %p218
        %p569 = scmp.lt.s32.totalorder %s37, 1
        %s570 = scalar_select %p569, %s37, 1
        %s571 = scalar_lea.vmem %s7, %s570
        %p572 = pneg %p247
        %p573 = pneg %p244
        %s574 = sand.u32 %s260, 1
        %s575 = scalar_lea.sflag [#allocation7], %s574
        %s576 = sand.u32 %s260, 1
        %s577 = smul.addr %s576, 16
        %s578 = scalar_lea.vmem [#allocation6], %s577
        %p579 = pneg %p273
        %p580 = pneg %p270
        %p581 = scmp.lt.s32.totalorder %s37, 1
        %s582 = scalar_select %p581, %s37, 1
        %s583 = scalar_lea.vmem %s9, %s582
        %p584 = pneg %p299
        %p585 = pneg %p296
        %p586 = scmp.lt.s32.totalorder %s37, 1
        %s587 = scalar_select %p586, %s37, 1
        %s588 = smul.addr %s587, 8
        %s589 = smul.addr %s588, 4
        %s590 = scalar_lea.vmem %s10, %s589
        %p591 = pneg %p325
        %p592 = pneg %p322
        %p593 = scmp.lt.s32.totalorder %s37, 1
        %s594 = scalar_select %p593, %s37, 1
        %s595 = scalar_lea.vmem %s11, %s594
        %p596 = pneg %p351
        %p597 = pneg %p348
        %p598 = pneg %p377
        %p599 = pneg %p374
        %s600 = sand.u32 %s364, 1
        %s601 = scalar_lea.sflag [#allocation5], %s600
        %s602 = sand.u32 %s364, 1
        %s603 = smul.addr %s602, 16
        %s604 = scalar_lea.vmem [#allocation8], %s603
        %s605 = smul.u32 2, %s36
        %p606 = scmp.lt.s32.totalorder %s605, 3
        %s607 = scalar_select %p606, %s605, 3
        %s608 = smul.addr %s607, 8
        %s609 = scalar_lea.vmem %s0, %s608
        %s610 = smul.u32 2, %s36
        %p611 = scmp.lt.s32.totalorder %s37, 1
        %s612 = scalar_select %p611, %s37, 1
        %s613 = scalar_lea.vmem %s2, %s612
        %p614 = scmp.lt.s32.totalorder %s37, 1
        %s615 = scalar_select %p614, %s37, 1
        %s616 = smul.addr %s615, 4
        %s617 = smul.addr %s616, 4
        %s618 = scalar_lea.vmem %s3, %s617
        %p619 = scmp.lt.s32.totalorder %s37, 1
        %s620 = scalar_select %p619, %s37, 1
        %s621 = smul.addr %s620, 4
        %s622 = smul.addr %s621, 4
        %s623 = scalar_lea.vmem %s4, %s622
        %p624 = scmp.lt.s32.totalorder %s37, 1
        %s625 = scalar_select %p624, %s37, 1
        %s626 = scalar_lea.vmem %s5, %s625
        %p627 = scmp.lt.s32.totalorder %s37, 1
        %s628 = scalar_select %p627, %s37, 1
        %s629 = scalar_lea.vmem %s6, %s628
        %p630 = scmp.lt.s32.totalorder %s37, 1
        %s631 = scalar_select %p630, %s37, 1
        %s632 = scalar_lea.vmem %s7, %s631
        %p633 = scmp.lt.s32.totalorder %s37, 1
        %s634 = scalar_select %p633, %s37, 1
        %s635 = scalar_lea.vmem %s9, %s634
        %p636 = scmp.lt.s32.totalorder %s37, 1
        %s637 = scalar_select %p636, %s37, 1
        %s638 = smul.addr %s637, 8
        %s639 = smul.addr %s638, 4
        %s640 = scalar_lea.vmem %s10, %s639
        %p641 = scmp.lt.s32.totalorder %s37, 1
        %s642 = scalar_select %p641, %s37, 1
        %s643 = scalar_lea.vmem %s11, %s642
        %s644 = smul.u32 2, %s36
        %p646 = scmp.eq.s32.totalorder %s37, 0
        // Predicated region
        $region77: #{tpu_custom_call.1} parent=67 // pred_check
          %p647 = pneg %p646
        $region78: #{tpu_custom_call.1} parent=67 // pred_check_branch
          %649 = sbr.rel (%p647) target = $region80
        $region79: #{tpu_custom_call.1} parent=67 // pred_region
          %v650 = vld [vmem:[%s609] sm:$0xff]
          %v651 = vld [vmem:[%s609 + $0x8] sm:$0xff]
          %vm652 = vcmask 261120
          %653 = vst.msk [vmem:[#allocation2] sm:$0xff] %vm652, %v650
          %654 = vst.msk [vmem:[#allocation2 + $0x8] sm:$0xff] %vm652, %v651
        $region80: #{tpu_custom_call.1} parent=67 // pred_fallthru
          _
        %v655 = vld [vmem:[#allocation2] sm:$0xff]
        %v656 = vld [vmem:[#allocation2 + $0x8] sm:$0xff]
        %v657 = vld [vmem:[%s513] sm:$0x1]
        %v658 = vld [vmem:[%s613] sm:$0x1]
        %vm659 = vcmask 261120
        %v660 = vsel %vm659, %v655, 0.0
        %661 = vadd.xlane.f32.xlu0 %v660
        %v662 = vpop.xlane.xlu0 %661
        %v663 = vsel %vm659, %v656, 0.0
        %664 = vadd.xlane.f32.xlu0 %v663
        %v665 = vpop.xlane.xlu0 %664
        %v666 = vrcp.pop 32.0
        %v667 = vmul.f32 %v662, %v666
        %v668 = vmul.f32 %v665, %v666
        %v669 = vsub.f32 %v655, %v667
        %v670 = vsub.f32 %v656, %v668
        %v671 = vmul.f32 %v669, %v669
        %v672 = vmul.f32 %v670, %v670
        %v673 = vsel %vm659, %v671, 0.0
        %674 = vadd.xlane.f32.xlu0 %v673
        %v675 = vpop.xlane.xlu0 %674
        %v676 = vsel %vm659, %v672, 0.0
        %677 = vadd.xlane.f32.xlu0 %v676
        %v678 = vpop.xlane.xlu0 %677
        %v679 = vmul.f32 %v675, %v666
        %v680 = vmul.f32 %v678, %v666
        %v681 = vadd.f32 %v679, 1e-05
        %v682 = vadd.f32 %v680, 1e-05
        %v683 = vrsqrt.pop %v681
        %v684 = vrsqrt.pop %v682
        %v685 = vmul.f32 %v669, %v683
        %v686 = vmul.f32 %v670, %v684
        %v688 = vlaneseq
        %v689 = vshrl.u32 %v688, 7
        %v690 = vsub.s32 0, %v689
        %v691 = vrot.slane %v657, %v690
        %v693 = vmul.f32 %v685, %v691
        %v694 = vmul.f32 %v686, %v691
        %v696 = vlaneseq
        %v697 = vshrl.u32 %v696, 7
        %v698 = vsub.s32 0, %v697
        %v699 = vrot.slane %v658, %v698
        %v701 = vadd.f32 %v693, %v699
        %v702 = vadd.f32 %v694, %v699
        %v703 = vpack.c.bf16 %v702, %v701
        %v704 = vld [vmem:[%s618] sm:$0xf]
        %v705 = vld [vmem:[%s618 + $0x4] sm:$0xf]
        %v706 = vld [vmem:[%s618 + $0x8] sm:$0xf]
        %v707 = vld [vmem:[%s618 + $0xc] sm:$0xf]
        %v712 = vunpack.c.l.b16 %v704
        %v713 = vunpack.c.l.b16 %v705
        %v714 = vunpack.c.l.b16 %v706
        %v715 = vunpack.c.l.b16 %v707
        %v716 = vpack.c.b16 %v713, %v712
        %v717 = vpack.c.b16 %v715, %v714
        %v721 = vsel %vm659, %v703, 0
        %723 = vmatprep.subr.bf16.mxu0 0
        %724 = vmatpush1.bf16.msra.mxu0 0
        %725 = vmatprep.subr.bf16.mxu0 0
        %726 = vmatpush1.bf16.msra.mxu0 0
        %727 = vmatprep.subr.bf16.mxu0 0
        %728 = vmatpush1.bf16.msra.mxu0 0
        %729 = vmatprep.subr.bf16.mxu0 0
        %730 = vmatpush1.bf16.msra.mxu0 0
        %731 = vmatprep.subr.bf16.mxu0 0
        %732 = vmatpush1.bf16.msra.mxu0 0
        %733 = vmatprep.subr.bf16.mxu0 0
        %734 = vmatpush1.bf16.msra.mxu0 0
        %735 = vmatprep.subr.bf16.mxu0 0
        %736 = vmatpush1.bf16.msra.mxu0 %v717
        %737 = vmatprep.subr.bf16.mxu0 0
        %738 = vmatpush1.bf16.msra.mxu0 %v716
        %739 = vmatprep.subr.bf16.mxu0 0
        %740 = vmatpush2.bf16.msra.mxu0 0
        %741 = vmatprep.subr.bf16.mxu0 0
        %742 = vmatpush2.bf16.msra.mxu0 0
        %743 = vmatprep.subr.bf16.mxu0 0
        %744 = vmatpush2.bf16.msra.mxu0 0
        %745 = vmatprep.subr.bf16.mxu0 0
        %746 = vmatpush2.bf16.msra.mxu0 0
        %747 = vmatprep.subr.bf16.mxu0 0
        %748 = vmatpush2.bf16.msra.mxu0 0
        %749 = vmatprep.subr.bf16.mxu0 0
        %750 = vmatpush2.bf16.msra.mxu0 0
        %751 = vmatprep.subr.bf16.mxu0 0
        %752 = vmatpush2.bf16.msra.mxu0 0
        %753 = vmatprep.subr.bf16.mxu0 0
        %754 = vmatpush2.bf16.msra.mxu0 0
        %755 = vmatprep.mubr.bf16.mxu0 0
        %756 = vmatmul.mubr.bf16.gmra.mxu0 %v721
        %v757 = vpop.f32.mrf.mxu0
        %v758 = vadd.f32 0.0, %v757
        %v759 = vpop.f32.mrf.mxu0
        %v760 = vpop.f32.mrf.mxu0
        %v761 = vadd.f32 0.0, %v760
        %v762 = vpop.f32.mrf.mxu0
        %763 = vdwg.mxu0
        %v764 = vpack.c.bf16 %v758, %v758
        %v765 = vpack.c.bf16 %v761, %v761
        %767 = vrot.lane.b32.xlu0 %v764, 96
        %v768 = vpop.permute.xlu0 %767
        %vm769 = vcmask 64512
        %v771 = vsel %vm769, %v764, 0
        %v774 = vsel %vm769, %v768, 0
        %776 = vmatprep.subr.bf16.mxu0 0
        %777 = vmatpush1.bf16.xpose.msra.mxu0 0
        %778 = vmatprep.subr.bf16.mxu0 0
        %779 = vmatpush1.bf16.xpose.msra.mxu0 0
        %780 = vmatprep.subr.bf16.mxu0 0
        %781 = vmatpush1.bf16.xpose.msra.mxu0 0
        %782 = vmatprep.subr.bf16.mxu0 0
        %783 = vmatpush1.bf16.xpose.msra.mxu0 0
        %784 = vmatprep.subr.bf16.mxu0 0
        %785 = vmatpush1.bf16.xpose.msra.mxu0 0
        %786 = vmatprep.subr.bf16.mxu0 0
        %787 = vmatpush1.bf16.xpose.msra.mxu0 0
        %788 = vmatprep.subr.bf16.mxu0 0
        %789 = vmatpush1.bf16.xpose.msra.mxu0 0
        %790 = vmatprep.subr.bf16.mxu0 0
        %791 = vmatpush1.bf16.xpose.msra.mxu0 %v774
        %792 = vmatprep.subr.bf16.mxu0 0
        %793 = vmatpush2.bf16.xpose.msra.mxu0 0
        %794 = vmatprep.subr.bf16.mxu0 0
        %795 = vmatpush2.bf16.xpose.msra.mxu0 0
        %796 = vmatprep.subr.bf16.mxu0 0
        %797 = vmatpush2.bf16.xpose.msra.mxu0 0
        %798 = vmatprep.subr.bf16.mxu0 0
        %799 = vmatpush2.bf16.xpose.msra.mxu0 0
        %800 = vmatprep.subr.bf16.mxu0 0
        %801 = vmatpush2.bf16.xpose.msra.mxu0 0
        %802 = vmatprep.subr.bf16.mxu0 0
        %803 = vmatpush2.bf16.xpose.msra.mxu0 0
        %804 = vmatprep.subr.bf16.mxu0 0
        %805 = vmatpush2.bf16.xpose.msra.mxu0 0
        %806 = vmatprep.subr.bf16.mxu0 0
        %807 = vmatpush2.bf16.xpose.msra.mxu0 0
        %808 = vmatprep.mubr.bf16.mxu0 0
        %809 = vmatmul.mubr.bf16.gmra.mxu0 %v771
        %v810 = vpop.f32.mrf.mxu0
        %v811 = vadd.f32 0.0, %v810
        %v812 = vpop.f32.mrf.mxu0
        %v813 = vpop.f32.mrf.mxu0
        %v814 = vpop.f32.mrf.mxu0
        %815 = vdwg.mxu0
        %817 = vrot.lane.b32.xlu0 %v765, 96
        %v818 = vpop.permute.xlu0 %817
        %v820 = vsel %vm769, %v765, 0
        %v823 = vsel %vm769, %v818, 0
        %825 = vmatprep.subr.bf16.mxu0 0
        %826 = vmatpush1.bf16.xpose.msra.mxu0 0
        %827 = vmatprep.subr.bf16.mxu0 0
        %828 = vmatpush1.bf16.xpose.msra.mxu0 0
        %829 = vmatprep.subr.bf16.mxu0 0
        %830 = vmatpush1.bf16.xpose.msra.mxu0 0
        %831 = vmatprep.subr.bf16.mxu0 0
        %832 = vmatpush1.bf16.xpose.msra.mxu0 0
        %833 = vmatprep.subr.bf16.mxu0 0
        %834 = vmatpush1.bf16.xpose.msra.mxu0 0
        %835 = vmatprep.subr.bf16.mxu0 0
        %836 = vmatpush1.bf16.xpose.msra.mxu0 0
        %837 = vmatprep.subr.bf16.mxu0 0
        %838 = vmatpush1.bf16.xpose.msra.mxu0 0
        %839 = vmatprep.subr.bf16.mxu0 0
        %840 = vmatpush1.bf16.xpose.msra.mxu0 %v823
        %841 = vmatprep.subr.bf16.mxu0 0
        %842 = vmatpush2.bf16.xpose.msra.mxu0 0
        %843 = vmatprep.subr.bf16.mxu0 0
        %844 = vmatpush2.bf16.xpose.msra.mxu0 0
        %845 = vmatprep.subr.bf16.mxu0 0
        %846 = vmatpush2.bf16.xpose.msra.mxu0 0
        %847 = vmatprep.subr.bf16.mxu0 0
        %848 = vmatpush2.bf16.xpose.msra.mxu0 0
        %849 = vmatprep.subr.bf16.mxu0 0
        %850 = vmatpush2.bf16.xpose.msra.mxu0 0
        %851 = vmatprep.subr.bf16.mxu0 0
        %852 = vmatpush2.bf16.xpose.msra.mxu0 0
        %853 = vmatprep.subr.bf16.mxu0 0
        %854 = vmatpush2.bf16.xpose.msra.mxu0 0
        %855 = vmatprep.subr.bf16.mxu0 0
        %856 = vmatpush2.bf16.xpose.msra.mxu0 0
        %857 = vmatprep.mubr.bf16.mxu0 0
        %858 = vmatmul.mubr.bf16.gmra.mxu0 %v820
        %v859 = vpop.f32.mrf.mxu0
        %v860 = vadd.f32 0.0, %v859
        %v861 = vpop.f32.mrf.mxu0
        %v862 = vpop.f32.mrf.mxu0
        %v863 = vpop.f32.mrf.mxu0
        %864 = vdwg.mxu0
        %v865 = vmul.f32 %v811, 0.35355338
        %v866 = vmul.f32 %v860, 0.35355338
        %v867 = vsel %vm769, %v865, -inf
        %868 = vmax.xlane.f32.xlu0 %v867
        %v869 = vpop.xlane.xlu0 %868
        %v870 = vsel %vm769, %v866, -inf
        %871 = vmax.xlane.f32.xlu0 %v870
        %v872 = vpop.xlane.xlu0 %871
        %v873 = vsub.f32 %v865, %v869
        %v874 = vsub.f32 %v866, %v872
        %v875 = vmul.f32 %v873, 1.442695
        %v876 = vpow.pop %v875
        %v877 = vmul.f32 %v874, 1.442695
        %v878 = vpow.pop %v877
        %v879 = vsel %vm769, %v876, 0.0
        %880 = vadd.xlane.f32.xlu0 %v879
        %v881 = vpop.xlane.xlu0 %880
        %v882 = vsel %vm769, %v878, 0.0
        %883 = vadd.xlane.f32.xlu0 %v882
        %v884 = vpop.xlane.xlu0 %883
        %v885 = vrcp.pop %v881
        %v886 = vrcp.pop %v884
        %v887 = vmul.f32 %v876, %v885
        %v888 = vmul.f32 %v878, %v886
        %v889 = vpack.c.bf16 %v887, %v887
        %v890 = vpack.c.bf16 %v888, %v888
        %891 = vrot.lane.b32.xlu0 %v764, 64
        %v892 = vpop.permute.xlu0 %891
        %v894 = vsel %vm769, %v889, 0
        %vm896 = vcmask 1043456
        %v898 = vsel %vm896, %v892, 0
        %900 = vmatprep.subr.bf16.mxu0 0
        %901 = vmatpush1.bf16.msra.mxu0 0
        %902 = vmatprep.subr.bf16.mxu0 0
        %903 = vmatpush1.bf16.msra.mxu0 0
        %904 = vmatprep.subr.bf16.mxu0 0
        %905 = vmatpush1.bf16.msra.mxu0 0
        %906 = vmatprep.subr.bf16.mxu0 0
        %907 = vmatpush1.bf16.msra.mxu0 0
        %908 = vmatprep.subr.bf16.mxu0 0
        %909 = vmatpush1.bf16.msra.mxu0 0
        %910 = vmatprep.subr.bf16.mxu0 0
        %911 = vmatpush1.bf16.msra.mxu0 0
        %912 = vmatprep.subr.bf16.mxu0 0
        %913 = vmatpush1.bf16.msra.mxu0 0
        %914 = vmatprep.subr.bf16.mxu0 0
        %915 = vmatpush1.bf16.msra.mxu0 %v898
        %916 = vmatprep.subr.bf16.mxu0 0
        %917 = vmatpush2.bf16.msra.mxu0 0
        %918 = vmatprep.subr.bf16.mxu0 0
        %919 = vmatpush2.bf16.msra.mxu0 0
        %920 = vmatprep.subr.bf16.mxu0 0
        %921 = vmatpush2.bf16.msra.mxu0 0
        %922 = vmatprep.subr.bf16.mxu0 0
        %923 = vmatpush2.bf16.msra.mxu0 0
        %924 = vmatprep.subr.bf16.mxu0 0
        %925 = vmatpush2.bf16.msra.mxu0 0
        %926 = vmatprep.subr.bf16.mxu0 0
        %927 = vmatpush2.bf16.msra.mxu0 0
        %928 = vmatprep.subr.bf16.mxu0 0
        %929 = vmatpush2.bf16.msra.mxu0 0
        %930 = vmatprep.subr.bf16.mxu0 0
        %931 = vmatpush2.bf16.msra.mxu0 0
        %932 = vmatprep.mubr.bf16.mxu0 0
        %933 = vmatmul.mubr.bf16.gmra.mxu0 %v894
        %v934 = vpop.f32.mrf.mxu0
        %v935 = vadd.f32 0.0, %v934
        %v936 = vpop.f32.mrf.mxu0
        %v937 = vpop.f32.mrf.mxu0
        %v938 = vpop.f32.mrf.mxu0
        %939 = vdwg.mxu0
        %940 = vrot.lane.b32.xlu0 %v765, 64
        %v941 = vpop.permute.xlu0 %940
        %v943 = vsel %vm769, %v890, 0
        %v946 = vsel %vm896, %v941, 0
        %948 = vmatprep.subr.bf16.mxu0 0
        %949 = vmatpush1.bf16.msra.mxu0 0
        %950 = vmatprep.subr.bf16.mxu0 0
        %951 = vmatpush1.bf16.msra.mxu0 0
        %952 = vmatprep.subr.bf16.mxu0 0
        %953 = vmatpush1.bf16.msra.mxu0 0
        %954 = vmatprep.subr.bf16.mxu0 0
        %955 = vmatpush1.bf16.msra.mxu0 0
        %956 = vmatprep.subr.bf16.mxu0 0
        %957 = vmatpush1.bf16.msra.mxu0 0
        %958 = vmatprep.subr.bf16.mxu0 0
        %959 = vmatpush1.bf16.msra.mxu0 0
        %960 = vmatprep.subr.bf16.mxu0 0
        %961 = vmatpush1.bf16.msra.mxu0 0
        %962 = vmatprep.subr.bf16.mxu0 0
        %963 = vmatpush1.bf16.msra.mxu0 %v946
        %964 = vmatprep.subr.bf16.mxu0 0
        %965 = vmatpush2.bf16.msra.mxu0 0
        %966 = vmatprep.subr.bf16.mxu0 0
        %967 = vmatpush2.bf16.msra.mxu0 0
        %968 = vmatprep.subr.bf16.mxu0 0
        %969 = vmatpush2.bf16.msra.mxu0 0
        %970 = vmatprep.subr.bf16.mxu0 0
        %971 = vmatpush2.bf16.msra.mxu0 0
        %972 = vmatprep.subr.bf16.mxu0 0
        %973 = vmatpush2.bf16.msra.mxu0 0
        %974 = vmatprep.subr.bf16.mxu0 0
        %975 = vmatpush2.bf16.msra.mxu0 0
        %976 = vmatprep.subr.bf16.mxu0 0
        %977 = vmatpush2.bf16.msra.mxu0 0
        %978 = vmatprep.subr.bf16.mxu0 0
        %979 = vmatpush2.bf16.msra.mxu0 0
        %980 = vmatprep.mubr.bf16.mxu0 0
        %981 = vmatmul.mubr.bf16.gmra.mxu0 %v943
        %v982 = vpop.f32.mrf.mxu0
        %v983 = vadd.f32 0.0, %v982
        %v984 = vpop.f32.mrf.mxu0
        %v985 = vpop.f32.mrf.mxu0
        %v986 = vpop.f32.mrf.mxu0
        %987 = vdwg.mxu0
        %988 = vrot.lane.b32.xlu0 %v764, 120
        %v989 = vpop.permute.xlu0 %988
        %990 = vrot.lane.b32.xlu0 %v764, 88
        %v991 = vpop.permute.xlu0 %990
        %v993 = vsel %vm769, %v989, 0
        %v996 = vsel %vm769, %v991, 0
        %998 = vmatprep.subr.bf16.mxu0 0
        %999 = vmatpush1.bf16.xpose.msra.mxu0 0
        %1000 = vmatprep.subr.bf16.mxu0 0
        %1001 = vmatpush1.bf16.xpose.msra.mxu0 0
        %1002 = vmatprep.subr.bf16.mxu0 0
        %1003 = vmatpush1.bf16.xpose.msra.mxu0 0
        %1004 = vmatprep.subr.bf16.mxu0 0
        %1005 = vmatpush1.bf16.xpose.msra.mxu0 0
        %1006 = vmatprep.subr.bf16.mxu0 0
        %1007 = vmatpush1.bf16.xpose.msra.mxu0 0
        %1008 = vmatprep.subr.bf16.mxu0 0
        %1009 = vmatpush1.bf16.xpose.msra.mxu0 0
        %1010 = vmatprep.subr.bf16.mxu0 0
        %1011 = vmatpush1.bf16.xpose.msra.mxu0 0
        %1012 = vmatprep.subr.bf16.mxu0 0
        %1013 = vmatpush1.bf16.xpose.msra.mxu0 %v996
        %1014 = vmatprep.subr.bf16.mxu0 0
        %1015 = vmatpush2.bf16.xpose.msra.mxu0 0
        %1016 = vmatprep.subr.bf16.mxu0 0
        %1017 = vmatpush2.bf16.xpose.msra.mxu0 0
        %1018 = vmatprep.subr.bf16.mxu0 0
        %1019 = vmatpush2.bf16.xpose.msra.mxu0 0
        %1020 = vmatprep.subr.bf16.mxu0 0
        %1021 = vmatpush2.bf16.xpose.msra.mxu0 0
        %1022 = vmatprep.subr.bf16.mxu0 0
        %1023 = vmatpush2.bf16.xpose.msra.mxu0 0
        %1024 = vmatprep.subr.bf16.mxu0 0
        %1025 = vmatpush2.bf16.xpose.msra.mxu0 0
        %1026 = vmatprep.subr.bf16.mxu0 0
        %1027 = vmatpush2.bf16.xpose.msra.mxu0 0
        %1028 = vmatprep.subr.bf16.mxu0 0
        %1029 = vmatpush2.bf16.xpose.msra.mxu0 0
        %1030 = vmatprep.mubr.bf16.mxu0 0
        %1031 = vmatmul.mubr.bf16.gmra.mxu0 %v993
        %v1032 = vpop.f32.mrf.mxu0
        %v1033 = vadd.f32 0.0, %v1032
        %v1034 = vpop.f32.mrf.mxu0
        %v1035 = vpop.f32.mrf.mxu0
        %v1036 = vpop.f32.mrf.mxu0
        %1037 = vdwg.mxu0
        %1038 = vrot.lane.b32.xlu0 %v765, 120
        %v1039 = vpop.permute.xlu0 %1038
        %1040 = vrot.lane.b32.xlu0 %v765, 88
        %v1041 = vpop.permute.xlu0 %1040
        %v1043 = vsel %vm769, %v1039, 0
        %v1046 = vsel %vm769, %v1041, 0
        %1048 = vmatprep.subr.bf16.mxu0 0
        %1049 = vmatpush1.bf16.xpose.msra.mxu0 0
        %1050 = vmatprep.subr.bf16.mxu0 0
        %1051 = vmatpush1.bf16.xpose.msra.mxu0 0
        %1052 = vmatprep.subr.bf16.mxu0 0
        %1053 = vmatpush1.bf16.xpose.msra.mxu0 0
        %1054 = vmatprep.subr.bf16.mxu0 0
        %1055 = vmatpush1.bf16.xpose.msra.mxu0 0
        %1056 = vmatprep.subr.bf16.mxu0 0
        %1057 = vmatpush1.bf16.xpose.msra.mxu0 0
        %1058 = vmatprep.subr.bf16.mxu0 0
        %1059 = vmatpush1.bf16.xpose.msra.mxu0 0
        %1060 = vmatprep.subr.bf16.mxu0 0
        %1061 = vmatpush1.bf16.xpose.msra.mxu0 0
        %1062 = vmatprep.subr.bf16.mxu0 0
        %1063 = vmatpush1.bf16.xpose.msra.mxu0 %v1046
        %1064 = vmatprep.subr.bf16.mxu0 0
        %1065 = vmatpush2.bf16.xpose.msra.mxu0 0
        %1066 = vmatprep.subr.bf16.mxu0 0
        %1067 = vmatpush2.bf16.xpose.msra.mxu0 0
        %1068 = vmatprep.subr.bf16.mxu0 0
        %1069 = vmatpush2.bf16.xpose.msra.mxu0 0
        %1070 = vmatprep.subr.bf16.mxu0 0
        %1071 = vmatpush2.bf16.xpose.msra.mxu0 0
        %1072 = vmatprep.subr.bf16.mxu0 0
        %1073 = vmatpush2.bf16.xpose.msra.mxu0 0
        %1074 = vmatprep.subr.bf16.mxu0 0
        %1075 = vmatpush2.bf16.xpose.msra.mxu0 0
        %1076 = vmatprep.subr.bf16.mxu0 0
        %1077 = vmatpush2.bf16.xpose.msra.mxu0 0
        %1078 = vmatprep.subr.bf16.mxu0 0
        %1079 = vmatpush2.bf16.xpose.msra.mxu0 0
        %1080 = vmatprep.mubr.bf16.mxu0 0
        %1081 = vmatmul.mubr.bf16.gmra.mxu0 %v1043
        %v1082 = vpop.f32.mrf.mxu0
        %v1083 = vadd.f32 0.0, %v1082
        %v1084 = vpop.f32.mrf.mxu0
        %v1085 = vpop.f32.mrf.mxu0
        %v1086 = vpop.f32.mrf.mxu0
        %1087 = vdwg.mxu0
        %v1088 = vmul.f32 %v1033, 0.35355338
        %v1089 = vmul.f32 %v1083, 0.35355338
        %v1090 = vsel %vm769, %v1088, -inf
        %1091 = vmax.xlane.f32.xlu0 %v1090
        %v1092 = vpop.xlane.xlu0 %1091
        %v1093 = vsel %vm769, %v1089, -inf
        %1094 = vmax.xlane.f32.xlu0 %v1093
        %v1095 = vpop.xlane.xlu0 %1094
        %v1096 = vsub.f32 %v1088, %v1092
        %v1097 = vsub.f32 %v1089, %v1095
        %v1098 = vmul.f32 %v1096, 1.442695
        %v1099 = vpow.pop %v1098
        %v1100 = vmul.f32 %v1097, 1.442695
        %v1101 = vpow.pop %v1100
        %v1102 = vsel %vm769, %v1099, 0.0
        %1103 = vadd.xlane.f32.xlu0 %v1102
        %v1104 = vpop.xlane.xlu0 %1103
        %v1105 = vsel %vm769, %v1101, 0.0
        %1106 = vadd.xlane.f32.xlu0 %v1105
        %v1107 = vpop.xlane.xlu0 %1106
        %v1108 = vrcp.pop %v1104
        %v1109 = vrcp.pop %v1107
        %v1110 = vmul.f32 %v1099, %v1108
        %v1111 = vmul.f32 %v1101, %v1109
        %v1112 = vpack.c.bf16 %v1110, %v1110
        %v1113 = vpack.c.bf16 %v1111, %v1111
        %1114 = vrot.lane.b32.xlu0 %v764, 56
        %v1115 = vpop.permute.xlu0 %1114
        %v1117 = vsel %vm769, %v1112, 0
        %v1120 = vsel %vm896, %v1115, 0
        %1122 = vmatprep.subr.bf16.mxu0 0
        %1123 = vmatpush1.bf16.msra.mxu0 0
        %1124 = vmatprep.subr.bf16.mxu0 0
        %1125 = vmatpush1.bf16.msra.mxu0 0
        %1126 = vmatprep.subr.bf16.mxu0 0
        %1127 = vmatpush1.bf16.msra.mxu0 0
        %1128 = vmatprep.subr.bf16.mxu0 0
        %1129 = vmatpush1.bf16.msra.mxu0 0
        %1130 = vmatprep.subr.bf16.mxu0 0
        %1131 = vmatpush1.bf16.msra.mxu0 0
        %1132 = vmatprep.subr.bf16.mxu0 0
        %1133 = vmatpush1.bf16.msra.mxu0 0
        %1134 = vmatprep.subr.bf16.mxu0 0
        %1135 = vmatpush1.bf16.msra.mxu0 0
        %1136 = vmatprep.subr.bf16.mxu0 0
        %1137 = vmatpush1.bf16.msra.mxu0 %v1120
        %1138 = vmatprep.subr.bf16.mxu0 0
        %1139 = vmatpush2.bf16.msra.mxu0 0
        %1140 = vmatprep.subr.bf16.mxu0 0
        %1141 = vmatpush2.bf16.msra.mxu0 0
        %1142 = vmatprep.subr.bf16.mxu0 0
        %1143 = vmatpush2.bf16.msra.mxu0 0
        %1144 = vmatprep.subr.bf16.mxu0 0
        %1145 = vmatpush2.bf16.msra.mxu0 0
        %1146 = vmatprep.subr.bf16.mxu0 0
        %1147 = vmatpush2.bf16.msra.mxu0 0
        %1148 = vmatprep.subr.bf16.mxu0 0
        %1149 = vmatpush2.bf16.msra.mxu0 0
        %1150 = vmatprep.subr.bf16.mxu0 0
        %1151 = vmatpush2.bf16.msra.mxu0 0
        %1152 = vmatprep.subr.bf16.mxu0 0
        %1153 = vmatpush2.bf16.msra.mxu0 0
        %1154 = vmatprep.mubr.bf16.mxu0 0
        %1155 = vmatmul.mubr.bf16.gmra.mxu0 %v1117
        %v1156 = vpop.f32.mrf.mxu0
        %v1157 = vadd.f32 0.0, %v1156
        %v1158 = vpop.f32.mrf.mxu0
        %v1159 = vpop.f32.mrf.mxu0
        %v1160 = vpop.f32.mrf.mxu0
        %1161 = vdwg.mxu0
        %1162 = vrot.lane.b32.xlu0 %v765, 56
        %v1163 = vpop.permute.xlu0 %1162
        %v1165 = vsel %vm769, %v1113, 0
        %v1168 = vsel %vm896, %v1163, 0
        %1170 = vmatprep.subr.bf16.mxu0 0
        %1171 = vmatpush1.bf16.msra.mxu0 0
        %1172 = vmatprep.subr.bf16.mxu0 0
        %1173 = vmatpush1.bf16.msra.mxu0 0
        %1174 = vmatprep.subr.bf16.mxu0 0
        %1175 = vmatpush1.bf16.msra.mxu0 0
        %1176 = vmatprep.subr.bf16.mxu0 0
        %1177 = vmatpush1.bf16.msra.mxu0 0
        %1178 = vmatprep.subr.bf16.mxu0 0
        %1179 = vmatpush1.bf16.msra.mxu0 0
        %1180 = vmatprep.subr.bf16.mxu0 0
        %1181 = vmatpush1.bf16.msra.mxu0 0
        %1182 = vmatprep.subr.bf16.mxu0 0
        %1183 = vmatpush1.bf16.msra.mxu0 0
        %1184 = vmatprep.subr.bf16.mxu0 0
        %1185 = vmatpush1.bf16.msra.mxu0 %v1168
        %1186 = vmatprep.subr.bf16.mxu0 0
        %1187 = vmatpush2.bf16.msra.mxu0 0
        %1188 = vmatprep.subr.bf16.mxu0 0
        %1189 = vmatpush2.bf16.msra.mxu0 0
        %1190 = vmatprep.subr.bf16.mxu0 0
        %1191 = vmatpush2.bf16.msra.mxu0 0
        %1192 = vmatprep.subr.bf16.mxu0 0
        %1193 = vmatpush2.bf16.msra.mxu0 0
        %1194 = vmatprep.subr.bf16.mxu0 0
        %1195 = vmatpush2.bf16.msra.mxu0 0
        %1196 = vmatprep.subr.bf16.mxu0 0
        %1197 = vmatpush2.bf16.msra.mxu0 0
        %1198 = vmatprep.subr.bf16.mxu0 0
        %1199 = vmatpush2.bf16.msra.mxu0 0
        %1200 = vmatprep.subr.bf16.mxu0 0
        %1201 = vmatpush2.bf16.msra.mxu0 0
        %1202 = vmatprep.mubr.bf16.mxu0 0
        %1203 = vmatmul.mubr.bf16.gmra.mxu0 %v1165
        %v1204 = vpop.f32.mrf.mxu0
        %v1205 = vadd.f32 0.0, %v1204
        %v1206 = vpop.f32.mrf.mxu0
        %v1207 = vpop.f32.mrf.mxu0
        %v1208 = vpop.f32.mrf.mxu0
        %1209 = vdwg.mxu0
        %1210 = vrot.lane.b32.xlu0 %v764, 112
        %v1211 = vpop.permute.xlu0 %1210
        %1212 = vrot.lane.b32.xlu0 %v764, 80
        %v1213 = vpop.permute.xlu0 %1212
        %v1215 = vsel %vm769, %v1211, 0
        %v1218 = vsel %vm769, %v1213, 0
        %1220 = vmatprep.subr.bf16.mxu0 0
        %1221 = vmatpush1.bf16.xpose.msra.mxu0 0
        %1222 = vmatprep.subr.bf16.mxu0 0
        %1223 = vmatpush1.bf16.xpose.msra.mxu0 0
        %1224 = vmatprep.subr.bf16.mxu0 0
        %1225 = vmatpush1.bf16.xpose.msra.mxu0 0
        %1226 = vmatprep.subr.bf16.mxu0 0
        %1227 = vmatpush1.bf16.xpose.msra.mxu0 0
        %1228 = vmatprep.subr.bf16.mxu0 0
        %1229 = vmatpush1.bf16.xpose.msra.mxu0 0
        %1230 = vmatprep.subr.bf16.mxu0 0
        %1231 = vmatpush1.bf16.xpose.msra.mxu0 0
        %1232 = vmatprep.subr.bf16.mxu0 0
        %1233 = vmatpush1.bf16.xpose.msra.mxu0 0
        %1234 = vmatprep.subr.bf16.mxu0 0
        %1235 = vmatpush1.bf16.xpose.msra.mxu0 %v1218
        %1236 = vmatprep.subr.bf16.mxu0 0
        %1237 = vmatpush2.bf16.xpose.msra.mxu0 0
        %1238 = vmatprep.subr.bf16.mxu0 0
        %1239 = vmatpush2.bf16.xpose.msra.mxu0 0
        %1240 = vmatprep.subr.bf16.mxu0 0
        %1241 = vmatpush2.bf16.xpose.msra.mxu0 0
        %1242 = vmatprep.subr.bf16.mxu0 0
        %1243 = vmatpush2.bf16.xpose.msra.mxu0 0
        %1244 = vmatprep.subr.bf16.mxu0 0
        %1245 = vmatpush2.bf16.xpose.msra.mxu0 0
        %1246 = vmatprep.subr.bf16.mxu0 0
        %1247 = vmatpush2.bf16.xpose.msra.mxu0 0
        %1248 = vmatprep.subr.bf16.mxu0 0
        %1249 = vmatpush2.bf16.xpose.msra.mxu0 0
        %1250 = vmatprep.subr.bf16.mxu0 0
        %1251 = vmatpush2.bf16.xpose.msra.mxu0 0
        %1252 = vmatprep.mubr.bf16.mxu0 0
        %1253 = vmatmul.mubr.bf16.gmra.mxu0 %v1215
        %v1254 = vpop.f32.mrf.mxu0
        %v1255 = vadd.f32 0.0, %v1254
        %v1256 = vpop.f32.mrf.mxu0
        %v1257 = vpop.f32.mrf.mxu0
        %v1258 = vpop.f32.mrf.mxu0
        %1259 = vdwg.mxu0
        %1260 = vrot.lane.b32.xlu0 %v765, 112
        %v1261 = vpop.permute.xlu0 %1260
        %1262 = vrot.lane.b32.xlu0 %v765, 80
        %v1263 = vpop.permute.xlu0 %1262
        %v1265 = vsel %vm769, %v1261, 0
        %v1268 = vsel %vm769, %v1263, 0
        %1270 = vmatprep.subr.bf16.mxu0 0
        %1271 = vmatpush1.bf16.xpose.msra.mxu0 0
        %1272 = vmatprep.subr.bf16.mxu0 0
        %1273 = vmatpush1.bf16.xpose.msra.mxu0 0
        %1274 = vmatprep.subr.bf16.mxu0 0
        %1275 = vmatpush1.bf16.xpose.msra.mxu0 0
        %1276 = vmatprep.subr.bf16.mxu0 0
        %1277 = vmatpush1.bf16.xpose.msra.mxu0 0
        %1278 = vmatprep.subr.bf16.mxu0 0
        %1279 = vmatpush1.bf16.xpose.msra.mxu0 0
        %1280 = vmatprep.subr.bf16.mxu0 0
        %1281 = vmatpush1.bf16.xpose.msra.mxu0 0
        %1282 = vmatprep.subr.bf16.mxu0 0
        %1283 = vmatpush1.bf16.xpose.msra.mxu0 0
        %1284 = vmatprep.subr.bf16.mxu0 0
        %1285 = vmatpush1.bf16.xpose.msra.mxu0 %v1268
        %1286 = vmatprep.subr.bf16.mxu0 0
        %1287 = vmatpush2.bf16.xpose.msra.mxu0 0
        %1288 = vmatprep.subr.bf16.mxu0 0
        %1289 = vmatpush2.bf16.xpose.msra.mxu0 0
        %1290 = vmatprep.subr.bf16.mxu0 0
        %1291 = vmatpush2.bf16.xpose.msra.mxu0 0
        %1292 = vmatprep.subr.bf16.mxu0 0
        %1293 = vmatpush2.bf16.xpose.msra.mxu0 0
        %1294 = vmatprep.subr.bf16.mxu0 0
        %1295 = vmatpush2.bf16.xpose.msra.mxu0 0
        %1296 = vmatprep.subr.bf16.mxu0 0
        %1297 = vmatpush2.bf16.xpose.msra.mxu0 0
        %1298 = vmatprep.subr.bf16.mxu0 0
        %1299 = vmatpush2.bf16.xpose.msra.mxu0 0
        %1300 = vmatprep.subr.bf16.mxu0 0
        %1301 = vmatpush2.bf16.xpose.msra.mxu0 0
        %1302 = vmatprep.mubr.bf16.mxu0 0
        %1303 = vmatmul.mubr.bf16.gmra.mxu0 %v1265
        %v1304 = vpop.f32.mrf.mxu0
        %v1305 = vadd.f32 0.0, %v1304
        %v1306 = vpop.f32.mrf.mxu0
        %v1307 = vpop.f32.mrf.mxu0
        %v1308 = vpop.f32.mrf.mxu0
        %1309 = vdwg.mxu0
        %v1310 = vmul.f32 %v1255, 0.35355338
        %v1311 = vmul.f32 %v1305, 0.35355338
        %v1312 = vsel %vm769, %v1310, -inf
        %1313 = vmax.xlane.f32.xlu0 %v1312
        %v1314 = vpop.xlane.xlu0 %1313
        %v1315 = vsel %vm769, %v1311, -inf
        %1316 = vmax.xlane.f32.xlu0 %v1315
        %v1317 = vpop.xlane.xlu0 %1316
        %v1318 = vsub.f32 %v1310, %v1314
        %v1319 = vsub.f32 %v1311, %v1317
        %v1320 = vmul.f32 %v1318, 1.442695
        %v1321 = vpow.pop %v1320
        %v1322 = vmul.f32 %v1319, 1.442695
        %v1323 = vpow.pop %v1322
        %v1324 = vsel %vm769, %v1321, 0.0
        %1325 = vadd.xlane.f32.xlu0 %v1324
        %v1326 = vpop.xlane.xlu0 %1325
        %v1327 = vsel %vm769, %v1323, 0.0
        %1328 = vadd.xlane.f32.xlu0 %v1327
        %v1329 = vpop.xlane.xlu0 %1328
        %v1330 = vrcp.pop %v1326
        %v1331 = vrcp.pop %v1329
        %v1332 = vmul.f32 %v1321, %v1330
        %v1333 = vmul.f32 %v1323, %v1331
        %v1334 = vpack.c.bf16 %v1332, %v1332
        %v1335 = vpack.c.bf16 %v1333, %v1333
        %1336 = vrot.lane.b32.xlu0 %v764, 48
        %v1337 = vpop.permute.xlu0 %1336
        %v1339 = vsel %vm769, %v1334, 0
        %v1342 = vsel %vm896, %v1337, 0
        %1344 = vmatprep.subr.bf16.mxu0 0
        %1345 = vmatpush1.bf16.msra.mxu0 0
        %1346 = vmatprep.subr.bf16.mxu0 0
        %1347 = vmatpush1.bf16.msra.mxu0 0
        %1348 = vmatprep.subr.bf16.mxu0 0
        %1349 = vmatpush1.bf16.msra.mxu0 0
        %1350 = vmatprep.subr.bf16.mxu0 0
        %1351 = vmatpush1.bf16.msra.mxu0 0
        %1352 = vmatprep.subr.bf16.mxu0 0
        %1353 = vmatpush1.bf16.msra.mxu0 0
        %1354 = vmatprep.subr.bf16.mxu0 0
        %1355 = vmatpush1.bf16.msra.mxu0 0
        %1356 = vmatprep.subr.bf16.mxu0 0
        %1357 = vmatpush1.bf16.msra.mxu0 0
        %1358 = vmatprep.subr.bf16.mxu0 0
        %1359 = vmatpush1.bf16.msra.mxu0 %v1342
        %1360 = vmatprep.subr.bf16.mxu0 0
        %1361 = vmatpush2.bf16.msra.mxu0 0
        %1362 = vmatprep.subr.bf16.mxu0 0
        %1363 = vmatpush2.bf16.msra.mxu0 0
        %1364 = vmatprep.subr.bf16.mxu0 0
        %1365 = vmatpush2.bf16.msra.mxu0 0
        %1366 = vmatprep.subr.bf16.mxu0 0
        %1367 = vmatpush2.bf16.msra.mxu0 0
        %1368 = vmatprep.subr.bf16.mxu0 0
        %1369 = vmatpush2.bf16.msra.mxu0 0
        %1370 = vmatprep.subr.bf16.mxu0 0
        %1371 = vmatpush2.bf16.msra.mxu0 0
        %1372 = vmatprep.subr.bf16.mxu0 0
        %1373 = vmatpush2.bf16.msra.mxu0 0
        %1374 = vmatprep.subr.bf16.mxu0 0
        %1375 = vmatpush2.bf16.msra.mxu0 0
        %1376 = vmatprep.mubr.bf16.mxu0 0
        %1377 = vmatmul.mubr.bf16.gmra.mxu0 %v1339
        %v1378 = vpop.f32.mrf.mxu0
        %v1379 = vadd.f32 0.0, %v1378
        %v1380 = vpop.f32.mrf.mxu0
        %v1381 = vpop.f32.mrf.mxu0
        %v1382 = vpop.f32.mrf.mxu0
        %1383 = vdwg.mxu0
        %1384 = vrot.lane.b32.xlu0 %v765, 48
        %v1385 = vpop.permute.xlu0 %1384
        %v1387 = vsel %vm769, %v1335, 0
        %v1390 = vsel %vm896, %v1385, 0
        %1392 = vmatprep.subr.bf16.mxu0 0
        %1393 = vmatpush1.bf16.msra.mxu0 0
        %1394 = vmatprep.subr.bf16.mxu0 0
        %1395 = vmatpush1.bf16.msra.mxu0 0
        %1396 = vmatprep.subr.bf16.mxu0 0
        %1397 = vmatpush1.bf16.msra.mxu0 0
        %1398 = vmatprep.subr.bf16.mxu0 0
        %1399 = vmatpush1.bf16.msra.mxu0 0
        %1400 = vmatprep.subr.bf16.mxu0 0
        %1401 = vmatpush1.bf16.msra.mxu0 0
        %1402 = vmatprep.subr.bf16.mxu0 0
        %1403 = vmatpush1.bf16.msra.mxu0 0
        %1404 = vmatprep.subr.bf16.mxu0 0
        %1405 = vmatpush1.bf16.msra.mxu0 0
        %1406 = vmatprep.subr.bf16.mxu0 0
        %1407 = vmatpush1.bf16.msra.mxu0 %v1390
        %1408 = vmatprep.subr.bf16.mxu0 0
        %1409 = vmatpush2.bf16.msra.mxu0 0
        %1410 = vmatprep.subr.bf16.mxu0 0
        %1411 = vmatpush2.bf16.msra.mxu0 0
        %1412 = vmatprep.subr.bf16.mxu0 0
        %1413 = vmatpush2.bf16.msra.mxu0 0
        %1414 = vmatprep.subr.bf16.mxu0 0
        %1415 = vmatpush2.bf16.msra.mxu0 0
        %1416 = vmatprep.subr.bf16.mxu0 0
        %1417 = vmatpush2.bf16.msra.mxu0 0
        %1418 = vmatprep.subr.bf16.mxu0 0
        %1419 = vmatpush2.bf16.msra.mxu0 0
        %1420 = vmatprep.subr.bf16.mxu0 0
        %1421 = vmatpush2.bf16.msra.mxu0 0
        %1422 = vmatprep.subr.bf16.mxu0 0
        %1423 = vmatpush2.bf16.msra.mxu0 0
        %1424 = vmatprep.mubr.bf16.mxu0 0
        %1425 = vmatmul.mubr.bf16.gmra.mxu0 %v1387
        %v1426 = vpop.f32.mrf.mxu0
        %v1427 = vadd.f32 0.0, %v1426
        %v1428 = vpop.f32.mrf.mxu0
        %v1429 = vpop.f32.mrf.mxu0
        %v1430 = vpop.f32.mrf.mxu0
        %1431 = vdwg.mxu0
        %1432 = vrot.lane.b32.xlu0 %v764, 104
        %v1433 = vpop.permute.xlu0 %1432
        %1434 = vrot.lane.b32.xlu0 %v764, 72
        %v1435 = vpop.permute.xlu0 %1434
        %v1437 = vsel %vm769, %v1433, 0
        %v1440 = vsel %vm769, %v1435, 0
        %1442 = vmatprep.subr.bf16.mxu0 0
        %1443 = vmatpush1.bf16.xpose.msra.mxu0 0
        %1444 = vmatprep.subr.bf16.mxu0 0
        %1445 = vmatpush1.bf16.xpose.msra.mxu0 0
        %1446 = vmatprep.subr.bf16.mxu0 0
        %1447 = vmatpush1.bf16.xpose.msra.mxu0 0
        %1448 = vmatprep.subr.bf16.mxu0 0
        %1449 = vmatpush1.bf16.xpose.msra.mxu0 0
        %1450 = vmatprep.subr.bf16.mxu0 0
        %1451 = vmatpush1.bf16.xpose.msra.mxu0 0
        %1452 = vmatprep.subr.bf16.mxu0 0
        %1453 = vmatpush1.bf16.xpose.msra.mxu0 0
        %1454 = vmatprep.subr.bf16.mxu0 0
        %1455 = vmatpush1.bf16.xpose.msra.mxu0 0
        %1456 = vmatprep.subr.bf16.mxu0 0
        %1457 = vmatpush1.bf16.xpose.msra.mxu0 %v1440
        %1458 = vmatprep.subr.bf16.mxu0 0
        %1459 = vmatpush2.bf16.xpose.msra.mxu0 0
        %1460 = vmatprep.subr.bf16.mxu0 0
        %1461 = vmatpush2.bf16.xpose.msra.mxu0 0
        %1462 = vmatprep.subr.bf16.mxu0 0
        %1463 = vmatpush2.bf16.xpose.msra.mxu0 0
        %1464 = vmatprep.subr.bf16.mxu0 0
        %1465 = vmatpush2.bf16.xpose.msra.mxu0 0
        %1466 = vmatprep.subr.bf16.mxu0 0
        %1467 = vmatpush2.bf16.xpose.msra.mxu0 0
        %1468 = vmatprep.subr.bf16.mxu0 0
        %1469 = vmatpush2.bf16.xpose.msra.mxu0 0
        %1470 = vmatprep.subr.bf16.mxu0 0
        %1471 = vmatpush2.bf16.xpose.msra.mxu0 0
        %1472 = vmatprep.subr.bf16.mxu0 0
        %1473 = vmatpush2.bf16.xpose.msra.mxu0 0
        %1474 = vmatprep.mubr.bf16.mxu0 0
        %1475 = vmatmul.mubr.bf16.gmra.mxu0 %v1437
        %v1476 = vpop.f32.mrf.mxu0
        %v1477 = vadd.f32 0.0, %v1476
        %v1478 = vpop.f32.mrf.mxu0
        %v1479 = vpop.f32.mrf.mxu0
        %v1480 = vpop.f32.mrf.mxu0
        %1481 = vdwg.mxu0
        %1482 = vrot.lane.b32.xlu0 %v765, 104
        %v1483 = vpop.permute.xlu0 %1482
        %1484 = vrot.lane.b32.xlu0 %v765, 72
        %v1485 = vpop.permute.xlu0 %1484
        %v1487 = vsel %vm769, %v1483, 0
        %v1490 = vsel %vm769, %v1485, 0
        %1492 = vmatprep.subr.bf16.mxu0 0
        %1493 = vmatpush1.bf16.xpose.msra.mxu0 0
        %1494 = vmatprep.subr.bf16.mxu0 0
        %1495 = vmatpush1.bf16.xpose.msra.mxu0 0
        %1496 = vmatprep.subr.bf16.mxu0 0
        %1497 = vmatpush1.bf16.xpose.msra.mxu0 0
        %1498 = vmatprep.subr.bf16.mxu0 0
        %1499 = vmatpush1.bf16.xpose.msra.mxu0 0
        %1500 = vmatprep.subr.bf16.mxu0 0
        %1501 = vmatpush1.bf16.xpose.msra.mxu0 0
        %1502 = vmatprep.subr.bf16.mxu0 0
        %1503 = vmatpush1.bf16.xpose.msra.mxu0 0
        %1504 = vmatprep.subr.bf16.mxu0 0
        %1505 = vmatpush1.bf16.xpose.msra.mxu0 0
        %1506 = vmatprep.subr.bf16.mxu0 0
        %1507 = vmatpush1.bf16.xpose.msra.mxu0 %v1490
        %1508 = vmatprep.subr.bf16.mxu0 0
        %1509 = vmatpush2.bf16.xpose.msra.mxu0 0
        %1510 = vmatprep.subr.bf16.mxu0 0
        %1511 = vmatpush2.bf16.xpose.msra.mxu0 0
        %1512 = vmatprep.subr.bf16.mxu0 0
        %1513 = vmatpush2.bf16.xpose.msra.mxu0 0
        %1514 = vmatprep.subr.bf16.mxu0 0
        %1515 = vmatpush2.bf16.xpose.msra.mxu0 0
        %1516 = vmatprep.subr.bf16.mxu0 0
        %1517 = vmatpush2.bf16.xpose.msra.mxu0 0
        %1518 = vmatprep.subr.bf16.mxu0 0
        %1519 = vmatpush2.bf16.xpose.msra.mxu0 0
        %1520 = vmatprep.subr.bf16.mxu0 0
        %1521 = vmatpush2.bf16.xpose.msra.mxu0 0
        %1522 = vmatprep.subr.bf16.mxu0 0
        %1523 = vmatpush2.bf16.xpose.msra.mxu0 0
        %1524 = vmatprep.mubr.bf16.mxu0 0
        %1525 = vmatmul.mubr.bf16.gmra.mxu0 %v1487
        %v1526 = vpop.f32.mrf.mxu0
        %v1527 = vadd.f32 0.0, %v1526
        %v1528 = vpop.f32.mrf.mxu0
        %v1529 = vpop.f32.mrf.mxu0
        %v1530 = vpop.f32.mrf.mxu0
        %1531 = vdwg.mxu0
        %v1532 = vmul.f32 %v1477, 0.35355338
        %v1533 = vmul.f32 %v1527, 0.35355338
        %v1534 = vsel %vm769, %v1532, -inf
        %1535 = vmax.xlane.f32.xlu0 %v1534
        %v1536 = vpop.xlane.xlu0 %1535
        %v1537 = vsel %vm769, %v1533, -inf
        %1538 = vmax.xlane.f32.xlu0 %v1537
        %v1539 = vpop.xlane.xlu0 %1538
        %v1540 = vsub.f32 %v1532, %v1536
        %v1541 = vsub.f32 %v1533, %v1539
        %v1542 = vmul.f32 %v1540, 1.442695
        %v1543 = vpow.pop %v1542
        %v1544 = vmul.f32 %v1541, 1.442695
        %v1545 = vpow.pop %v1544
        %v1546 = vsel %vm769, %v1543, 0.0
        %1547 = vadd.xlane.f32.xlu0 %v1546
        %v1548 = vpop.xlane.xlu0 %1547
        %v1549 = vsel %vm769, %v1545, 0.0
        %1550 = vadd.xlane.f32.xlu0 %v1549
        %v1551 = vpop.xlane.xlu0 %1550
        %v1552 = vrcp.pop %v1548
        %v1553 = vrcp.pop %v1551
        %v1554 = vmul.f32 %v1543, %v1552
        %v1555 = vmul.f32 %v1545, %v1553
        %v1556 = vpack.c.bf16 %v1554, %v1554
        %v1557 = vpack.c.bf16 %v1555, %v1555
        %1558 = vrot.lane.b32.xlu0 %v764, 40
        %v1559 = vpop.permute.xlu0 %1558
        %v1561 = vsel %vm769, %v1556, 0
        %v1564 = vsel %vm896, %v1559, 0
        %1566 = vmatprep.subr.bf16.mxu0 0
        %1567 = vmatpush1.bf16.msra.mxu0 0
        %1568 = vmatprep.subr.bf16.mxu0 0
        %1569 = vmatpush1.bf16.msra.mxu0 0
        %1570 = vmatprep.subr.bf16.mxu0 0
        %1571 = vmatpush1.bf16.msra.mxu0 0
        %1572 = vmatprep.subr.bf16.mxu0 0
        %1573 = vmatpush1.bf16.msra.mxu0 0
        %1574 = vmatprep.subr.bf16.mxu0 0
        %1575 = vmatpush1.bf16.msra.mxu0 0
        %1576 = vmatprep.subr.bf16.mxu0 0
        %1577 = vmatpush1.bf16.msra.mxu0 0
        %1578 = vmatprep.subr.bf16.mxu0 0
        %1579 = vmatpush1.bf16.msra.mxu0 0
        %1580 = vmatprep.subr.bf16.mxu0 0
        %1581 = vmatpush1.bf16.msra.mxu0 %v1564
        %1582 = vmatprep.subr.bf16.mxu0 0
        %1583 = vmatpush2.bf16.msra.mxu0 0
        %1584 = vmatprep.subr.bf16.mxu0 0
        %1585 = vmatpush2.bf16.msra.mxu0 0
        %1586 = vmatprep.subr.bf16.mxu0 0
        %1587 = vmatpush2.bf16.msra.mxu0 0
        %1588 = vmatprep.subr.bf16.mxu0 0
        %1589 = vmatpush2.bf16.msra.mxu0 0
        %1590 = vmatprep.subr.bf16.mxu0 0
        %1591 = vmatpush2.bf16.msra.mxu0 0
        %1592 = vmatprep.subr.bf16.mxu0 0
        %1593 = vmatpush2.bf16.msra.mxu0 0
        %1594 = vmatprep.subr.bf16.mxu0 0
        %1595 = vmatpush2.bf16.msra.mxu0 0
        %1596 = vmatprep.subr.bf16.mxu0 0
        %1597 = vmatpush2.bf16.msra.mxu0 0
        %1598 = vmatprep.mubr.bf16.mxu0 0
        %1599 = vmatmul.mubr.bf16.gmra.mxu0 %v1561
        %v1600 = vpop.f32.mrf.mxu0
        %v1601 = vadd.f32 0.0, %v1600
        %v1602 = vpop.f32.mrf.mxu0
        %v1603 = vpop.f32.mrf.mxu0
        %v1604 = vpop.f32.mrf.mxu0
        %1605 = vdwg.mxu0
        %1606 = vrot.lane.b32.xlu0 %v765, 40
        %v1607 = vpop.permute.xlu0 %1606
        %v1609 = vsel %vm769, %v1557, 0
        %v1612 = vsel %vm896, %v1607, 0
        %1614 = vmatprep.subr.bf16.mxu0 0
        %1615 = vmatpush1.bf16.msra.mxu0 0
        %1616 = vmatprep.subr.bf16.mxu0 0
        %1617 = vmatpush1.bf16.msra.mxu0 0
        %1618 = vmatprep.subr.bf16.mxu0 0
        %1619 = vmatpush1.bf16.msra.mxu0 0
        %1620 = vmatprep.subr.bf16.mxu0 0
        %1621 = vmatpush1.bf16.msra.mxu0 0
        %1622 = vmatprep.subr.bf16.mxu0 0
        %1623 = vmatpush1.bf16.msra.mxu0 0
        %1624 = vmatprep.subr.bf16.mxu0 0
        %1625 = vmatpush1.bf16.msra.mxu0 0
        %1626 = vmatprep.subr.bf16.mxu0 0
        %1627 = vmatpush1.bf16.msra.mxu0 0
        %1628 = vmatprep.subr.bf16.mxu0 0
        %1629 = vmatpush1.bf16.msra.mxu0 %v1612
        %1630 = vmatprep.subr.bf16.mxu0 0
        %1631 = vmatpush2.bf16.msra.mxu0 0
        %1632 = vmatprep.subr.bf16.mxu0 0
        %1633 = vmatpush2.bf16.msra.mxu0 0
        %1634 = vmatprep.subr.bf16.mxu0 0
        %1635 = vmatpush2.bf16.msra.mxu0 0
        %1636 = vmatprep.subr.bf16.mxu0 0
        %1637 = vmatpush2.bf16.msra.mxu0 0
        %1638 = vmatprep.subr.bf16.mxu0 0
        %1639 = vmatpush2.bf16.msra.mxu0 0
        %1640 = vmatprep.subr.bf16.mxu0 0
        %1641 = vmatpush2.bf16.msra.mxu0 0
        %1642 = vmatprep.subr.bf16.mxu0 0
        %1643 = vmatpush2.bf16.msra.mxu0 0
        %1644 = vmatprep.subr.bf16.mxu0 0
        %1645 = vmatpush2.bf16.msra.mxu0 0
        %1646 = vmatprep.mubr.bf16.mxu0 0
        %1647 = vmatmul.mubr.bf16.gmra.mxu0 %v1609
        %v1648 = vpop.f32.mrf.mxu0
        %v1649 = vadd.f32 0.0, %v1648
        %v1650 = vpop.f32.mrf.mxu0
        %v1651 = vpop.f32.mrf.mxu0
        %v1652 = vpop.f32.mrf.mxu0
        %1653 = vdwg.mxu0
        %1656 = vrot.lane.b32.xlu0 %v1157, 8
        %v1657 = vpop.permute.xlu0 %1656
        %1658 = vrot.lane.b32.xlu0 %v1205, 8
        %v1659 = vpop.permute.xlu0 %1658
        %1664 = vrot.lane.b32.xlu0 %v1379, 16
        %v1665 = vpop.permute.xlu0 %1664
        %1666 = vrot.lane.b32.xlu0 %v1427, 16
        %v1667 = vpop.permute.xlu0 %1666
        %1672 = vrot.lane.b32.xlu0 %v1601, 24
        %v1673 = vpop.permute.xlu0 %1672
        %1674 = vrot.lane.b32.xlu0 %v1649, 24
        %v1675 = vpop.permute.xlu0 %1674
        %v1678 = vsel %vm769, %v935, %v1657
        %v1679 = vsel %vm769, %v983, %v1659
        %vm1680 = vcmask 130048
        %v1681 = vsel %vm1680, %v1678, %v1665
        %v1682 = vsel %vm1680, %v1679, %v1667
        %vm1683 = vcmask 195584
        %v1684 = vsel %vm1683, %v1681, %v1673
        %v1685 = vsel %vm1683, %v1682, %v1675
        %v1686 = vpack.c.bf16 %v1685, %v1684
        %v1687 = vld [vmem:[%s623] sm:$0xf]
        %v1688 = vld [vmem:[%s623 + $0x4] sm:$0xf]
        %v1689 = vld [vmem:[%s623 + $0x8] sm:$0xf]
        %v1690 = vld [vmem:[%s623 + $0xc] sm:$0xf]
        %v1695 = vunpack.c.l.b16 %v1687
        %v1696 = vunpack.c.l.b16 %v1688
        %v1697 = vunpack.c.l.b16 %v1689
        %v1698 = vunpack.c.l.b16 %v1690
        %v1699 = vpack.c.b16 %v1696, %v1695
        %v1700 = vpack.c.b16 %v1698, %v1697
        %v1704 = vsel %vm659, %v1686, 0
        %1706 = vmatprep.subr.bf16.mxu0 0
        %1707 = vmatpush1.bf16.msra.mxu0 0
        %1708 = vmatprep.subr.bf16.mxu0 0
        %1709 = vmatpush1.bf16.msra.mxu0 0
        %1710 = vmatprep.subr.bf16.mxu0 0
        %1711 = vmatpush1.bf16.msra.mxu0 0
        %1712 = vmatprep.subr.bf16.mxu0 0
        %1713 = vmatpush1.bf16.msra.mxu0 0
        %1714 = vmatprep.subr.bf16.mxu0 0
        %1715 = vmatpush1.bf16.msra.mxu0 0
        %1716 = vmatprep.subr.bf16.mxu0 0
        %1717 = vmatpush1.bf16.msra.mxu0 0
        %1718 = vmatprep.subr.bf16.mxu0 0
        %1719 = vmatpush1.bf16.msra.mxu0 %v1700
        %1720 = vmatprep.subr.bf16.mxu0 0
        %1721 = vmatpush1.bf16.msra.mxu0 %v1699
        %1722 = vmatprep.subr.bf16.mxu0 0
        %1723 = vmatpush2.bf16.msra.mxu0 0
        %1724 = vmatprep.subr.bf16.mxu0 0
        %1725 = vmatpush2.bf16.msra.mxu0 0
        %1726 = vmatprep.subr.bf16.mxu0 0
        %1727 = vmatpush2.bf16.msra.mxu0 0
        %1728 = vmatprep.subr.bf16.mxu0 0
        %1729 = vmatpush2.bf16.msra.mxu0 0
        %1730 = vmatprep.subr.bf16.mxu0 0
        %1731 = vmatpush2.bf16.msra.mxu0 0
        %1732 = vmatprep.subr.bf16.mxu0 0
        %1733 = vmatpush2.bf16.msra.mxu0 0
        %1734 = vmatprep.subr.bf16.mxu0 0
        %1735 = vmatpush2.bf16.msra.mxu0 0
        %1736 = vmatprep.subr.bf16.mxu0 0
        %1737 = vmatpush2.bf16.msra.mxu0 0
        %1738 = vmatprep.mubr.bf16.mxu0 0
        %1739 = vmatmul.mubr.bf16.gmra.mxu0 %v1704
        %v1740 = vpop.f32.mrf.mxu0
        %v1741 = vadd.f32 0.0, %v1740
        %v1742 = vpop.f32.mrf.mxu0
        %v1743 = vpop.f32.mrf.mxu0
        %v1744 = vadd.f32 0.0, %v1743
        %v1745 = vpop.f32.mrf.mxu0
        %1746 = vdwg.mxu0
        %v1747 = vadd.f32 %v655, %v1741
        %v1748 = vadd.f32 %v656, %v1744
        %v1749 = vld [vmem:[%s626] sm:$0x1]
        %v1751 = vlaneseq
        %v1752 = vshrl.u32 %v1751, 7
        %v1753 = vsub.s32 0, %v1752
        %v1754 = vrot.slane %v1749, %v1753
        %v1756 = vadd.f32 %v1747, %v1754
        %v1757 = vadd.f32 %v1748, %v1754
        %v1758 = vld [vmem:[%s629] sm:$0x1]
        %v1759 = vld [vmem:[%s632] sm:$0x1]
        %v1760 = vsel %vm659, %v1756, 0.0
        %1761 = vadd.xlane.f32.xlu0 %v1760
        %v1762 = vpop.xlane.xlu0 %1761
        %v1763 = vsel %vm659, %v1757, 0.0
        %1764 = vadd.xlane.f32.xlu0 %v1763
        %v1765 = vpop.xlane.xlu0 %1764
        %v1766 = vmul.f32 %v1762, %v666
        %v1767 = vmul.f32 %v1765, %v666
        %v1768 = vsub.f32 %v1756, %v1766
        %v1769 = vsub.f32 %v1757, %v1767
        %v1770 = vmul.f32 %v1768, %v1768
        %v1771 = vmul.f32 %v1769, %v1769
        %v1772 = vsel %vm659, %v1770, 0.0
        %1773 = vadd.xlane.f32.xlu0 %v1772
        %v1774 = vpop.xlane.xlu0 %1773
        %v1775 = vsel %vm659, %v1771, 0.0
        %1776 = vadd.xlane.f32.xlu0 %v1775
        %v1777 = vpop.xlane.xlu0 %1776
        %v1778 = vmul.f32 %v1774, %v666
        %v1779 = vmul.f32 %v1777, %v666
        %v1780 = vadd.f32 %v1778, 1e-05
        %v1781 = vadd.f32 %v1779, 1e-05
        %v1782 = vrsqrt.pop %v1780
        %v1783 = vrsqrt.pop %v1781
        %v1784 = vmul.f32 %v1768, %v1782
        %v1785 = vmul.f32 %v1769, %v1783
        %v1787 = vlaneseq
        %v1788 = vshrl.u32 %v1787, 7
        %v1789 = vsub.s32 0, %v1788
        %v1790 = vrot.slane %v1758, %v1789
        %v1792 = vmul.f32 %v1784, %v1790
        %v1793 = vmul.f32 %v1785, %v1790
        %v1795 = vlaneseq
        %v1796 = vshrl.u32 %v1795, 7
        %v1797 = vsub.s32 0, %v1796
        %v1798 = vrot.slane %v1759, %v1797
        %v1800 = vadd.f32 %v1792, %v1798
        %v1801 = vadd.f32 %v1793, %v1798
        %v1802 = vpack.c.bf16 %v1801, %v1800
        %v1803 = vld [vmem:[%s522] sm:$0xf]
        %v1804 = vld [vmem:[%s522 + $0x4] sm:$0xf]
        %v1805 = vld [vmem:[%s522 + $0x8] sm:$0xf]
        %v1806 = vld [vmem:[%s522 + $0xc] sm:$0xf]
        %v1807 = vld [vmem:[%s635] sm:$0x1]
        %v1809 = vlaneseq
        %v1810 = vshrl.u32 %v1809, 7
        %v1811 = vsub.s32 0, %v1810
        %v1812 = vrot.slane %v1807, %v1811
        %v1818 = vunpack.c.l.b16 %v1803
        %v1819 = vunpack.c.l.b16 %v1804
        %v1820 = vunpack.c.l.b16 %v1805
        %v1821 = vunpack.c.l.b16 %v1806
        %v1822 = vpack.c.b16 %v1819, %v1818
        %v1823 = vpack.c.b16 %v1821, %v1820
        %v1827 = vsel %vm659, %v1802, 0
        %1829 = vmatprep.subr.bf16.mxu0 0
        %1830 = vmatpush1.bf16.msra.mxu0 0
        %1831 = vmatprep.subr.bf16.mxu0 0
        %1832 = vmatpush1.bf16.msra.mxu0 0
        %1833 = vmatprep.subr.bf16.mxu0 0
        %1834 = vmatpush1.bf16.msra.mxu0 0
        %1835 = vmatprep.subr.bf16.mxu0 0
        %1836 = vmatpush1.bf16.msra.mxu0 0
        %1837 = vmatprep.subr.bf16.mxu0 0
        %1838 = vmatpush1.bf16.msra.mxu0 0
        %1839 = vmatprep.subr.bf16.mxu0 0
        %1840 = vmatpush1.bf16.msra.mxu0 0
        %1841 = vmatprep.subr.bf16.mxu0 0
        %1842 = vmatpush1.bf16.msra.mxu0 %v1823
        %1843 = vmatprep.subr.bf16.mxu0 0
        %1844 = vmatpush1.bf16.msra.mxu0 %v1822
        %1845 = vmatprep.subr.bf16.mxu0 0
        %1846 = vmatpush2.bf16.msra.mxu0 0
        %1847 = vmatprep.subr.bf16.mxu0 0
        %1848 = vmatpush2.bf16.msra.mxu0 0
        %1849 = vmatprep.subr.bf16.mxu0 0
        %1850 = vmatpush2.bf16.msra.mxu0 0
        %1851 = vmatprep.subr.bf16.mxu0 0
        %1852 = vmatpush2.bf16.msra.mxu0 0
        %1853 = vmatprep.subr.bf16.mxu0 0
        %1854 = vmatpush2.bf16.msra.mxu0 0
        %1855 = vmatprep.subr.bf16.mxu0 0
        %1856 = vmatpush2.bf16.msra.mxu0 0
        %1857 = vmatprep.subr.bf16.mxu0 0
        %1858 = vmatpush2.bf16.msra.mxu0 0
        %1859 = vmatprep.subr.bf16.mxu0 0
        %1860 = vmatpush2.bf16.msra.mxu0 0
        %1861 = vmatprep.mubr.bf16.mxu0 0
        %1862 = vmatmul.mubr.bf16.gmra.mxu0 %v1827
        %v1863 = vpop.f32.mrf.mxu0
        %v1864 = vadd.f32 %v1812, %v1863
        %v1865 = vpop.f32.mrf.mxu0
        %v1866 = vpop.f32.mrf.mxu0
        %v1867 = vadd.f32 %v1812, %v1866
        %v1868 = vpop.f32.mrf.mxu0
        %1869 = vdwg.mxu0
        %v1870 = vmul.f32 %v1864, 0.5
        %v1871 = vmul.f32 %v1867, 0.5
        %v1872 = vmul.f32 %v1864, 0.044715
        %v1873 = vmul.f32 %v1867, 0.044715
        %v1874 = vmul.f32 %v1872, %v1864
        %v1875 = vmul.f32 %v1873, %v1867
        %v1876 = vmul.f32 %v1874, %v1864
        %v1877 = vmul.f32 %v1875, %v1867
        %v1878 = vadd.f32 %v1864, %v1876
        %v1879 = vadd.f32 %v1867, %v1877
        %v1880 = vmul.f32 %v1878, 0.7978846
        %v1881 = vmul.f32 %v1879, 0.7978846
        %v1882 = vtanh.pop %v1880
        %v1883 = vtanh.pop %v1881
        %v1884 = vadd.f32 %v1882, 1.0
        %v1885 = vadd.f32 %v1883, 1.0
        %v1886 = vmul.f32 %v1870, %v1884
        %v1887 = vmul.f32 %v1871, %v1885
        %v1888 = vpack.c.bf16 %v1887, %v1886
        %v1889 = vld [vmem:[%s640] sm:$0xf]
        %v1890 = vld [vmem:[%s640 + $0x4] sm:$0xf]
        %v1891 = vld [vmem:[%s640 + $0x8] sm:$0xf]
        %v1892 = vld [vmem:[%s640 + $0xc] sm:$0xf]
        %v1893 = vld [vmem:[%s640 + $0x10] sm:$0xf]
        %v1894 = vld [vmem:[%s640 + $0x14] sm:$0xf]
        %v1895 = vld [vmem:[%s640 + $0x18] sm:$0xf]
        %v1896 = vld [vmem:[%s640 + $0x1c] sm:$0xf]
        %v1897 = vld [vmem:[%s643] sm:$0x1]
        %v1899 = vlaneseq
        %v1900 = vshrl.u32 %v1899, 7
        %v1901 = vsub.s32 0, %v1900
        %v1902 = vrot.slane %v1897, %v1901
        %v1912 = vunpack.c.l.b16 %v1889
        %v1913 = vunpack.c.l.b16 %v1890
        %v1914 = vunpack.c.l.b16 %v1891
        %v1915 = vunpack.c.l.b16 %v1892
        %v1916 = vunpack.c.l.b16 %v1893
        %v1917 = vunpack.c.l.b16 %v1894
        %v1918 = vunpack.c.l.b16 %v1895
        %v1919 = vunpack.c.l.b16 %v1896
        %v1920 = vpack.c.b16 %v1913, %v1912
        %v1921 = vpack.c.b16 %v1915, %v1914
        %v1922 = vpack.c.b16 %v1917, %v1916
        %v1923 = vpack.c.b16 %v1919, %v1918
        %vm1928 = vcmask 523264
        %v1930 = vsel %vm1928, %v1888, 0
        %1932 = vmatprep.subr.bf16.mxu0 0
        %1933 = vmatpush1.bf16.msra.mxu0 0
        %1934 = vmatprep.subr.bf16.mxu0 0
        %1935 = vmatpush1.bf16.msra.mxu0 0
        %1936 = vmatprep.subr.bf16.mxu0 0
        %1937 = vmatpush1.bf16.msra.mxu0 0
        %1938 = vmatprep.subr.bf16.mxu0 0
        %1939 = vmatpush1.bf16.msra.mxu0 0
        %1940 = vmatprep.subr.bf16.mxu0 0
        %1941 = vmatpush1.bf16.msra.mxu0 %v1923
        %1942 = vmatprep.subr.bf16.mxu0 0
        %1943 = vmatpush1.bf16.msra.mxu0 %v1922
        %1944 = vmatprep.subr.bf16.mxu0 0
        %1945 = vmatpush1.bf16.msra.mxu0 %v1921
        %1946 = vmatprep.subr.bf16.mxu0 0
        %1947 = vmatpush1.bf16.msra.mxu0 %v1920
        %1948 = vmatprep.subr.bf16.mxu0 0
        %1949 = vmatpush2.bf16.msra.mxu0 0
        %1950 = vmatprep.subr.bf16.mxu0 0
        %1951 = vmatpush2.bf16.msra.mxu0 0
        %1952 = vmatprep.subr.bf16.mxu0 0
        %1953 = vmatpush2.bf16.msra.mxu0 0
        %1954 = vmatprep.subr.bf16.mxu0 0
        %1955 = vmatpush2.bf16.msra.mxu0 0
        %1956 = vmatprep.subr.bf16.mxu0 0
        %1957 = vmatpush2.bf16.msra.mxu0 0
        %1958 = vmatprep.subr.bf16.mxu0 0
        %1959 = vmatpush2.bf16.msra.mxu0 0
        %1960 = vmatprep.subr.bf16.mxu0 0
        %1961 = vmatpush2.bf16.msra.mxu0 0
        %1962 = vmatprep.subr.bf16.mxu0 0
        %1963 = vmatpush2.bf16.msra.mxu0 0
        %1964 = vmatprep.mubr.bf16.mxu0 0
        %1965 = vmatmul.mubr.bf16.gmra.mxu0 %v1930
        %v1966 = vpop.f32.mrf.mxu0
        %v1967 = vadd.f32 %v1902, %v1966
        %v1968 = vpop.f32.mrf.mxu0
        %v1969 = vpop.f32.mrf.mxu0
        %v1970 = vadd.f32 %v1902, %v1969
        %v1971 = vpop.f32.mrf.mxu0
        %1972 = vdwg.mxu0
        %v1973 = vadd.f32 %v1756, %v1967
        %v1974 = vadd.f32 %v1757, %v1970
        %1975 = vst.msk [vmem:[#allocation2] sm:$0xff] %vm659, %v1973
        %1976 = vst.msk [vmem:[#allocation2 + $0x8] sm:$0xff] %vm659, %v1974
        %p1977 = scmp.eq.s32.totalorder %s37, 1
        // Predicated region
        $region81: #{tpu_custom_call.1} parent=67 // pred_check
          %p1978 = pneg %p1977
        $region82: #{tpu_custom_call.1} parent=67 // pred_check_branch
          %1980 = sbr.rel (%p1978) target = $region84
        $region83: #{tpu_custom_call.1} parent=67 // pred_region
          %1981 = vst.msk [vmem:[%s604] sm:$0xff] %vm659, %v1973
          %1982 = vst.msk [vmem:[%s604 + $0x8] sm:$0xff] %vm659, %v1974
        $region84: #{tpu_custom_call.1} parent=67 // pred_fallthru
          _
        %s1983 = sand.u32 %s364, 1
        %s1984 = scalar_lea.sflag [#allocation5], %s1983
        %s1985 = sand.u32 %s364, 1
        %s1986 = smul.addr %s1985, 16
        %s1987 = scalar_lea.vmem [#allocation8], %s1986
        // Predicated region
        $region85: #{tpu_custom_call.1} parent=67 // pred_check
          %p1988 = pneg %p374
        $region86: #{tpu_custom_call.1} parent=67 // pred_check_branch
          %1990 = sbr.rel (%p1988) target = $region88
        $region87: #{tpu_custom_call.1} parent=67 // pred_region
          %s1991 = smul.u32 2, %s36
          %s1993 = ssub.s32 256, 256
          %1994 = vsyncadd %s1984, %s1993
          %s1995 = smul.addr %s1991, 128
          %s1996 = scalar_lea.hbm %s12, %s1995
          %s1997 = sshll.u32 %s1987, 4
          %s1998 = int_to_ptr.vmem [resolvable:$true] %s1997
          %2003 = dma.vmem_to_hbm [thread:$0]  %s1998, 256, %s1996, %s1984, 128, 128, 8
        $region88: #{tpu_custom_call.1} parent=67 // pred_fallthru
          _
      $region68: #{tpu_custom_call.1} parent=5 // pred_fallthru
        _
      %p2004 = scmp.le.s32.totalorder 2, %s27
      // Predicated region
      $region89: #{tpu_custom_call.1} parent=5 // pred_check
        %p2005 = pneg %p2004
      $region90: #{tpu_custom_call.1} parent=5 // pred_check_branch
        %2007 = sbr.rel (%p2005) target = $region92
      $region91: #{tpu_custom_call.1} parent=5 // pred_region
        %s2008 = ssub.s32 %s27, 2
        // Predicated region
        $region93: #{tpu_custom_call.1} parent=91 // pred_check
          %p2009 = pneg %p380
        $region94: #{tpu_custom_call.1} parent=91 // pred_check_branch
          %2011 = sbr.rel (%p2009) target = $region96
        $region95: #{tpu_custom_call.1} parent=91 // pred_region
          %s2012 = sand.u32 %s365, 1
          %s2013 = scalar_lea.sflag [#allocation5], %s2012
          %s2014 = sand.u32 %s365, 1
          %s2015 = smul.addr %s2014, 16
          %s2016 = scalar_lea.vmem [#allocation8], %s2015
          %2017 = dma.done %s2013, 256
        $region96: #{tpu_custom_call.1} parent=91 // pred_fallthru
          _
      $region92: #{tpu_custom_call.1} parent=5 // pred_fallthru
        _
    $region6: #{tpu_custom_call.1} parent=1 // loop_footer
      %s31 = sadd.s32 1, %s27
    $region7: #{tpu_custom_call.1} parent=1 // loop_footer_branch
      %26 = sbr.rel target = $region3
    $region8: #{tpu_custom_call.1} parent=1 // loop_exit
      _
    %2018 = vsyncpa [#allocation4], 1
    %s2019 = scalar_lea.sflag [#allocation4], 1
    %2020 = vsyncpa %s2019, 1
    %2021 = vsyncpa [#allocation7], 1
    %s2022 = scalar_lea.sflag [#allocation7], 1
    %2023 = vsyncpa %s2022, 1
    %2024 = vsyncpa [#allocation5], 1
    %s2025 = scalar_lea.sflag [#allocation5], 1
    %2026 = vsyncpa %s2025, 1

</llo_original>
